<compile_context>
chip_gen: v5e
topology: v5e:2x2
jax: 0.10.0
libtpu: 0.0.40
codegen_flags: <defaults>
</compile_context>

<pallas_src>
import functools

import jax
import jax.numpy as jnp
from jax.experimental import pallas as pl
from jax.experimental.pallas import tpu as pltpu


# ----------------------------- helpers ---------------------------------------

def _pick_tile(n, target, unit=128):
    """Largest multiple of `unit` dividing n that is <= target (or n if n <= target /
    no such divisor exists)."""
    if n <= target:
        return n
    c = (target // unit) * unit
    while c >= unit:
        if n % c == 0:
            return c
        c -= unit
    return n


def _rope_tables(P, Dh, theta):
    inv_freq = 1.0 / (theta ** (jnp.arange(0, Dh, 2, dtype=jnp.float32) / Dh))
    t = jnp.arange(P, dtype=jnp.float32)
    freqs = jnp.outer(t, inv_freq)                   # (P, Dh/2)
    emb = jnp.concatenate([freqs, freqs], axis=-1)   # (P, Dh)
    return jnp.cos(emb), jnp.sin(emb)


# ----------------------------- Pallas kernels --------------------------------

def _in_proj_kernel(x_ref, w_ref, b_ref, o_ref):
    # NOTE: casts f32 features to bf16 before the MXU matmul (tiny precision delta vs f32).
    x = x_ref[...].astype(jnp.bfloat16)
    y = jnp.dot(x, w_ref[...], preferred_element_type=jnp.float32) + b_ref[...]
    o_ref[...] = y.astype(o_ref.dtype)


def _decoder_kernel(h0_ref, cos_ref, sin_ref, ln1_ref, ln2_ref,
                    wq_ref, wk_ref, wv_ref, wo_ref, wg_ref, wu_ref, wd_ref,
                    out_ref, attn_ref, hn_ref, *,
                    B, P, H, KVH, Dh, eps, scale):
    """One grid step = (layer l, MLP-intermediate chunk t).

    out_ref is the resident (B*P, E) residual stream (same block every step);
    attn_ref / hn_ref are persistent VMEM scratch.
    """
    l = pl.program_id(0)
    t = pl.program_id(1)
    G = H // KVH
    d2 = Dh // 2

    @pl.when((l == 0) & (t == 0))
    def _init():
        out_ref[...] = h0_ref[...]

    # ---- attention block + MLP pre-norm: once per layer (chunk t == 0) ----
    @pl.when(t == 0)
    def _attention():
        x = out_ref[...]                                              # (M, E) f32 residual
        var = jnp.mean(x * x, axis=-1, keepdims=True)
        hn = (x * jax.lax.rsqrt(var + eps) * ln1_ref[...]).astype(jnp.bfloat16)

        q = jnp.dot(hn, wq_ref[...], preferred_element_type=jnp.float32)   # (M, H*Dh)
        k = jnp.dot(hn, wk_ref[...], preferred_element_type=jnp.float32)   # (M, KVH*Dh)
        v = jnp.dot(hn, wv_ref[...], preferred_element_type=jnp.float32)

        cos = cos_ref[...]                                            # (P, Dh)
        sin = sin_ref[...]

        def rope(u):                                                  # u: (P, Dh)
            u_rot = jnp.concatenate([-u[:, d2:], u[:, :d2]], axis=-1)
            return u * cos + u_rot * sin

        row = jax.lax.broadcasted_iota(jnp.int32, (P, P), 0)
        col = jax.lax.broadcasted_iota(jnp.int32, (P, P), 1)
        causal = col <= row

        # Statically unrolled over (batch, kv-head, group head); M = B*P is tiny so the
        # attention math is negligible next to the projections.  Each head writes its
        # result directly into a lane slice of the VMEM scratch (no concatenates).
        for b in range(B):
            r0 = b * P
            for kv in range(KVH):
                kh = rope(k[r0:r0 + P, kv * Dh:(kv + 1) * Dh])
                vh = v[r0:r0 + P, kv * Dh:(kv + 1) * Dh].astype(jnp.bfloat16)
                for g in range(G):
                    hh = kv * G + g
                    qh = rope(q[r0:r0 + P, hh * Dh:(hh + 1) * Dh])
                    s = jax.lax.dot_general(qh, kh, (((1,), (1,)), ((), ())),
                                            preferred_element_type=jnp.float32) * scale
                    s = jnp.where(causal, s, -1e30)
                    m = jnp.max(s, axis=-1, keepdims=True)
                    p = jnp.exp(s - m)
                    p = p * pl.reciprocal(jnp.sum(p, axis=-1, keepdims=True), approx=True)
                    oh = jnp.dot(p.astype(jnp.bfloat16), vh,
                                 preferred_element_type=jnp.float32)        # (P, Dh)
                    attn_ref[r0:r0 + P, hh * Dh:(hh + 1) * Dh] = oh.astype(jnp.bfloat16)

        o = jnp.dot(attn_ref[...], wo_ref[...], preferred_element_type=jnp.float32)
        x = x + o
        out_ref[...] = x

        # Post-attention RMSNorm, reused by every MLP chunk of this layer.
        var2 = jnp.mean(x * x, axis=-1, keepdims=True)
        hn_ref[...] = (x * jax.lax.rsqrt(var2 + eps) * ln2_ref[...]).astype(jnp.bfloat16)

    # ---- MLP: one intermediate-dim chunk per grid step ----
    hn2 = hn_ref[...]
    g = jnp.dot(hn2, wg_ref[...], preferred_element_type=jnp.float32)        # (M, I_t)
    u = jnp.dot(hn2, wu_ref[...], preferred_element_type=jnp.float32)
    act = (g * jax.nn.sigmoid(g) * u).astype(jnp.bfloat16)                   # SwiGLU
    out_ref[...] = out_ref[...] + jnp.dot(act, wd_ref[...],
                                          preferred_element_type=jnp.float32)


def _final_kernel(h_ref, ln_ref, w_ref, b_ref, o_ref, *, eps):
    x = h_ref[...]
    var = jnp.mean(x * x, axis=-1, keepdims=True)
    hn = (x * jax.lax.rsqrt(var + eps) * ln_ref[...]).astype(jnp.bfloat16)   # == .to(bfloat16)
    y = jnp.dot(hn, w_ref[...], preferred_element_type=jnp.float32) + b_ref[...]
    o_ref[...] = y.astype(o_ref.dtype)


# ----------------------------- forward ---------------------------------------

def soft_prompt_forward(params, cfg, image_features):
    B = image_features.shape[0]
    P, E, F = cfg["prompt_len"], cfg["embed_dim"], cfg["feature_dim"]
    H, KVH, Dh = cfg["num_heads"], cfg["num_kv_heads"], cfg["head_dim"]
    I, L = cfg["intermediate"], cfg["num_layers"]
    eps = cfg["rms_eps"]
    scale = 1.0 / (Dh ** 0.5)
    M = B * P
    N = P * E
    HDh, KVD = H * Dh, KVH * Dh

    # ---- in_proj: (B, F) @ (F, P*E), tiled over output columns (pipelined weight DMA) ----
    nt = _pick_tile(N, 2048)
    h = pl.pallas_call(
        _in_proj_kernel,
        out_shape=jax.ShapeDtypeStruct((B, N), jnp.float32),
        grid=(N // nt,),
        in_specs=[pl.BlockSpec((B, F), lambda j: (0, 0)),
                  pl.BlockSpec((F, nt), lambda j: (0, j)),
                  pl.BlockSpec((1, nt), lambda j: (0, j))],
        out_specs=pl.BlockSpec((B, nt), lambda j: (0, j)),
        compiler_params=pltpu.CompilerParams(dimension_semantics=("parallel",)),
        cost_estimate=pl.CostEstimate(flops=2 * B * F * N, transcendentals=0,
                                      bytes_accessed=2 * F * N + 4 * (B * F + B * N + N)),
    )(image_features, params["in_proj_w"], params["in_proj_b"])
    h = h.reshape(M, E)    # == reshape(-1, prompt_len, embed_dim), flattened to rows

    # ---- fused decoder: one pallas_call, grid = (layers, MLP-intermediate chunks) ----
    cos, sin = _rope_tables(P, Dh, cfg["rope_theta"])
    it = _pick_tile(I, 1024)       # keeps per-step weight working set v7x-friendly at real sizes
    T = I // it

    dec = functools.partial(_decoder_kernel, B=B, P=P, H=H, KVH=KVH, Dh=Dh,
                            eps=eps, scale=scale)

    attn_w_bytes = 2 * (E * HDh + 2 * E * KVD + HDh * E)
    mlp_w_bytes = 2 * (2 * E * it + it * E)
    vmem_est = 2 * (attn_w_bytes + mlp_w_bytes) + 6 * M * E * 4 + 2 * M * HDh * 2 + (2 << 20)
    flops = L * (2 * M * (E * HDh + 2 * E * KVD + HDh * E + 3 * E * I)
                 + 4 * B * H * P * P * Dh)
    transc = L * (M * I + B * H * P * P)
    bytes_acc = L * (attn_w_bytes + 2 * 3 * E * I) + 2 * M * E * 4

    h = pl.pallas_call(
        dec,
        out_shape=jax.ShapeDtypeStruct((M, E), jnp.float32),
        grid=(L, T),
        in_specs=[
            pl.BlockSpec((M, E), lambda l, t: (0, 0)),                 # initial hidden state
            pl.BlockSpec((P, Dh), lambda l, t: (0, 0)),                # rope cos
            pl.BlockSpec((P, Dh), lambda l, t: (0, 0)),                # rope sin
            pl.BlockSpec((None, 1, E), lambda l, t: (l, 0, 0)),        # input_layernorm
            pl.BlockSpec((None, 1, E), lambda l, t: (l, 0, 0)),        # post_attn_layernorm
            pl.BlockSpec((None, E, HDh), lambda l, t: (l, 0, 0)),      # q_proj
            pl.BlockSpec((None, E, KVD), lambda l, t: (l, 0, 0)),      # k_proj
            pl.BlockSpec((None, E, KVD), lambda l, t: (l, 0, 0)),      # v_proj
            pl.BlockSpec((None, HDh, E), lambda l, t: (l, 0, 0)),      # o_proj
            pl.BlockSpec((None, E, it), lambda l, t: (l, 0, t)),       # gate_proj chunk
            pl.BlockSpec((None, E, it), lambda l, t: (l, 0, t)),       # up_proj chunk
            pl.BlockSpec((None, it, E), lambda l, t: (l, t, 0)),       # down_proj chunk
        ],
        out_specs=pl.BlockSpec((M, E), lambda l, t: (0, 0)),
        scratch_shapes=[pltpu.VMEM((M, HDh), jnp.bfloat16),            # attention heads out
                        pltpu.VMEM((M, E), jnp.bfloat16)],             # post-attn RMSNorm
        input_output_aliases={0: 0},                                   # residual updated in place
        compiler_params=pltpu.CompilerParams(
            dimension_semantics=("arbitrary", "arbitrary"),
            vmem_limit_bytes=int(min(max(vmem_est, 32 * 1024 * 1024), 100 * 1024 * 1024))),
        cost_estimate=pl.CostEstimate(flops=int(flops), transcendentals=int(transc),
                                      bytes_accessed=int(bytes_acc)),
    )(h, cos, sin, params["ln1"], params["ln2"],
      params["wq"], params["wk"], params["wv"], params["wo"],
      params["wg"], params["wu"], params["wd"])

    # ---- final RMSNorm (== hidden_states[-1]) -> bf16 -> output projection (lane padded) ----
    Fp = params["out_proj_w"].shape[1]

    def _fs(shape):
        n = len(shape)
        return pl.BlockSpec(shape, lambda *_: (0,) * n)

    out = pl.pallas_call(
        functools.partial(_final_kernel, eps=eps),
        out_shape=jax.ShapeDtypeStruct((M, Fp), jnp.bfloat16),
        in_specs=[_fs((M, E)), _fs((1, E)), _fs((E, Fp)), _fs((1, Fp))],
        out_specs=_fs((M, Fp)),
    )(h, params["final_ln"], params["out_proj_w"], params["out_proj_b"])
    return out[:, :F].reshape(B, P, F)


# ----------------------------- params -----------------------------------------

def init_params(key, cfg):
    # TODO(synk): the real module loads pretrained TinyLlama weights via AutoModel;
    # here the generator weights are initialized deterministically in-script instead.
    F, P, E = cfg["feature_dim"], cfg["prompt_len"], cfg["embed_dim"]
    H, KVH, Dh, I = cfg["num_heads"], cfg["num_kv_heads"], cfg["head_dim"], cfg["intermediate"]

    def dense(k, fan_in, fan_out):
        return jax.random.normal(k, (fan_in, fan_out), jnp.float32) * 0.02

    keys = iter(jax.random.split(key, 2 + 7 * cfg["num_layers"]))
    params = {
        "in_proj_w": dense(next(keys), F, P * E),
        "in_proj_b": jnp.zeros((P * E,), jnp.float32),
        "out_proj_w": dense(next(keys), E, F),
        "out_proj_b": jnp.zeros((F,), jnp.float32),
        "final_ln": jnp.ones((E,), jnp.float32),
        "layers": [],
    }
    for _ in range(cfg["num_layers"]):
        params["layers"].append({
            "input_ln": jnp.ones((E,), jnp.float32),
            "post_ln": jnp.ones((E,), jnp.float32),
            "q_proj": dense(next(keys), E, H * Dh),
            "k_proj": dense(next(keys), E, KVH * Dh),
            "v_proj": dense(next(keys), E, KVH * Dh),
            "o_proj": dense(next(keys), H * Dh, E),
            "gate_proj": dense(next(keys), E, I),
            "up_proj": dense(next(keys), E, I),
            "down_proj": dense(next(keys), I, E),
        })
    return params


def prepare_params(params, cfg):
    """One-time weight prep: bf16 weights stacked over layers (leading L axis so a single
    fused pallas_call indexes layer l via BlockSpec), 2-D norms/biases, lane-padded out_proj."""
    E, F = cfg["embed_dim"], cfg["feature_dim"]
    Fp = ((F + 127) // 128) * 128

    def stack(name, dtype=jnp.bfloat16):
        return jnp.stack([lyr[name] for lyr in params["layers"]]).astype(dtype)

    out_w = params["out_proj_w"].astype(jnp.bfloat16)
    out_b = params["out_proj_b"].astype(jnp.float32)
    if Fp != F:
        out_w = jnp.pad(out_w, ((0, 0), (0, Fp - F)))
        out_b = jnp.pad(out_b, ((0, Fp - F),))

    return {
        "in_proj_w": params["in_proj_w"].astype(jnp.bfloat16),
        "in_proj_b": params["in_proj_b"].reshape(1, -1).astype(jnp.float32),
        "out_proj_w": out_w,
        "out_proj_b": out_b.reshape(1, -1),
        "final_ln": params["final_ln"].reshape(1, E).astype(jnp.float32),
        "ln1": stack("input_ln", jnp.float32).reshape(-1, 1, E),
        "ln2": stack("post_ln", jnp.float32).reshape(-1, 1, E),
        "wq": stack("q_proj"),
        "wk": stack("k_proj"),
        "wv": stack("v_proj"),
        "wo": stack("o_proj"),
        "wg": stack("gate_proj"),
        "wu": stack("up_proj"),
        "wd": stack("down_proj"),
    }


if __name__ == "__main__":
    cfg = dict(feature_dim=32, prompt_len=8, embed_dim=64, num_layers=2,
               num_heads=4, num_kv_heads=2, head_dim=16, intermediate=128,
               rms_eps=1e-5, rope_theta=10000.0)

    key = jax.random.PRNGKey(0)
    pkey, xkey = jax.random.split(key)
    params = prepare_params(init_params(pkey, cfg), cfg)
    image_features = jax.random.normal(xkey, (2, cfg["feature_dim"]), jnp.float32)

    fwd = jax.jit(lambda p, x: soft_prompt_forward(p, cfg, x))
    soft_prompt = fwd(params, image_features)
    jax.block_until_ready(soft_prompt)

    assert soft_prompt.shape == (2, cfg["prompt_len"], cfg["feature_dim"])
    assert soft_prompt.dtype == jnp.bfloat16
    assert bool(jnp.all(jnp.isfinite(soft_prompt.astype(jnp.float32))))
    print("KERNEL_OK")
</pallas_src>

<mosaic_0001>
module attributes {stable_mosaic.version = 11 : i64} {
  func.func @_in_proj_kernel(%arg0: i32, %arg1: memref<2x32xf32, #tpu.memory_space<vmem>>, %arg2: memref<32x512xbf16, #tpu.memory_space<vmem>>, %arg3: memref<1x512xf32, #tpu.memory_space<vmem>>, %arg4: memref<2x512xf32, #tpu.memory_space<vmem>>) attributes {dimension_semantics = [#tpu.dimension_semantics<parallel>], iteration_bounds = array<i64: 1>, scalar_prefetch = 0 : i64, scratch_operands = 0 : i64, tpu.core_type = #tpu.core_type<tc>, window_params = [{pipeline_mode = #tpu.pipeline_mode<synchronous>, transform_indices = @transform_0, window_bounds = array<i64: 2, 32>}, {transform_indices = @transform_1, window_bounds = array<i64: 32, 512>}, {transform_indices = @transform_2, window_bounds = array<i64: 1, 512>}, {transform_indices = @transform_3, window_bounds = array<i64: 2, 512>}]} {
    %c0 = arith.constant 0 : index
    %c0_0 = arith.constant 0 : index
    %0 = vector.load %arg1[%c0, %c0_0] : memref<2x32xf32, #tpu.memory_space<vmem>>, vector<2x32xf32>
    %1 = arith.truncf %0 : vector<2x32xf32> to vector<2x32xbf16>
    %c0_1 = arith.constant 0 : index
    %c0_2 = arith.constant 0 : index
    %2 = vector.load %arg2[%c0_1, %c0_2] : memref<32x512xbf16, #tpu.memory_space<vmem>>, vector<32x512xbf16>
    %cst = arith.constant dense<0.000000e+00> : vector<2x512xf32>
    %3 = tpu.matmul %1, %2, %cst {dimension_numbers = #tpu.dot_dimension_numbers<[1], [0], [0], [1], [0, 0, 1, 1], [], []>} : vector<2x32xbf16>, vector<32x512xbf16>, vector<2x512xf32> -> vector<2x512xf32>
    %c0_3 = arith.constant 0 : index
    %c0_4 = arith.constant 0 : index
    %4 = vector.load %arg3[%c0_3, %c0_4] : memref<1x512xf32, #tpu.memory_space<vmem>>, vector<1x512xf32>
    %5 = vector.broadcast %4 : vector<1x512xf32> to vector<2x512xf32>
    %6 = arith.addf %3, %5 : vector<2x512xf32>
    %c0_5 = arith.constant 0 : index
    %c0_6 = arith.constant 0 : index
    %7 = vector.load %arg4[%c0_5, %c0_6] : memref<2x512xf32, #tpu.memory_space<vmem>>, vector<2x512xf32>
    tpu.vector_store %arg4[%c0_5, %c0_6], %6 {strides = array<i32>} : memref<2x512xf32, #tpu.memory_space<vmem>>, vector<2x512xf32>,
    return
  }
  func.func @transform_0(%arg0: i32) -> (i32, i32) {
    %c0_i32 = arith.constant 0 : i32
    %c0_i32_0 = arith.constant 0 : i32
    %c0_i32_1 = arith.constant 0 : i32
    return %c0_i32, %c0_i32_0 : i32, i32
  }
  func.func @transform_1(%arg0: i32) -> (i32, i32) {
    %c0_i32 = arith.constant 0 : i32
    %c0_i32_0 = arith.constant 0 : i32
    return %c0_i32, %arg0 : i32, i32
  }
  func.func @transform_2(%arg0: i32) -> (i32, i32) {
    %c0_i32 = arith.constant 0 : i32
    %c0_i32_0 = arith.constant 0 : i32
    return %c0_i32, %arg0 : i32, i32
  }
  func.func @transform_3(%arg0: i32) -> (i32, i32) {
    %c0_i32 = arith.constant 0 : i32
    %c0_i32_0 = arith.constant 0 : i32
    return %c0_i32, %arg0 : i32, i32
  }
}

module attributes {stable_mosaic.version = 11 : i64} {
  func.func @_final_kernel(%arg0: memref<16x64xf32, #tpu.memory_space<vmem>>, %arg1: memref<1x64xf32, #tpu.memory_space<vmem>>, %arg2: memref<64x128xbf16, #tpu.memory_space<vmem>>, %arg3: memref<1x128xf32, #tpu.memory_space<vmem>>, %arg4: memref<16x128xbf16, #tpu.memory_space<vmem>>) attributes {dimension_semantics = [], scalar_prefetch = 0 : i64, scratch_operands = 0 : i64, tpu.core_type = #tpu.core_type<tc>} {
    %c0 = arith.constant 0 : index
    %c0_0 = arith.constant 0 : index
    %0 = vector.load %arg0[%c0, %c0_0] : memref<16x64xf32, #tpu.memory_space<vmem>>, vector<16x64xf32>
    %1 = arith.mulf %0, %0 : vector<16x64xf32>
    %cst = arith.constant dense<0.000000e+00> : vector<16xf32>
    %2 = vector.multi_reduction <add>, %1, %cst [1] : vector<16x64xf32> to vector<16xf32>
    %3 = vector.shape_cast %2 : vector<16xf32> to vector<16x1xf32>
    %cst_1 = arith.constant 6.400000e+01 : f32
    %4 = vector.broadcast %cst_1 : f32 to vector<16x1xf32>
    %5 = arith.divf %3, %4 : vector<16x1xf32>
    %cst_2 = arith.constant 9.99999974E-6 : f32
    %6 = vector.broadcast %cst_2 : f32 to vector<16x1xf32>
    %7 = arith.addf %5, %6 : vector<16x1xf32>
    %8 = math.rsqrt %7 : vector<16x1xf32>
    %9 = vector.broadcast %8 : vector<16x1xf32> to vector<16x64xf32>
    %10 = arith.mulf %0, %9 : vector<16x64xf32>
    %c0_3 = arith.constant 0 : index
    %c0_4 = arith.constant 0 : index
    %11 = vector.load %arg1[%c0_3, %c0_4] : memref<1x64xf32, #tpu.memory_space<vmem>>, vector<1x64xf32>
    %12 = vector.broadcast %11 : vector<1x64xf32> to vector<16x64xf32>
    %13 = arith.mulf %10, %12 : vector<16x64xf32>
    %14 = arith.truncf %13 : vector<16x64xf32> to vector<16x64xbf16>
    %c0_5 = arith.constant 0 : index
    %c0_6 = arith.constant 0 : index
    %15 = vector.load %arg2[%c0_5, %c0_6] : memref<64x128xbf16, #tpu.memory_space<vmem>>, vector<64x128xbf16>
    %cst_7 = arith.constant dense<0.000000e+00> : vector<16x128xf32>
    %16 = tpu.matmul %14, %15, %cst_7 {dimension_numbers = #tpu.dot_dimension_numbers<[1], [0], [0], [1], [0, 0, 1, 1], [], []>} : vector<16x64xbf16>, vector<64x128xbf16>, vector<16x128xf32> -> vector<16x128xf32>
    %c0_8 = arith.constant 0 : index
    %c0_9 = arith.constant 0 : index
    %17 = vector.load %arg3[%c0_8, %c0_9] : memref<1x128xf32, #tpu.memory_space<vmem>>, vector<1x128xf32>
    %18 = vector.broadcast %17 : vector<1x128xf32> to vector<16x128xf32>
    %19 = arith.addf %16, %18 : vector<16x128xf32>
    %20 = arith.truncf %19 : vector<16x128xf32> to vector<16x128xbf16>
    %c0_10 = arith.constant 0 : index
    %c0_11 = arith.constant 0 : index
    %21 = vector.load %arg4[%c0_10, %c0_11] : memref<16x128xbf16, #tpu.memory_space<vmem>>, vector<16x128xbf16>
    tpu.vector_store %arg4[%c0_10, %c0_11], %20 {strides = array<i32>} : memref<16x128xbf16, #tpu.memory_space<vmem>>, vector<16x128xbf16>,
    return
  }
}

module attributes {stable_mosaic.version = 11 : i64} {
  func.func @_decoder_kernel(%arg0: i32, %arg1: i32, %arg2: memref<16x64xf32, #tpu.memory_space<vmem>>, %arg3: memref<8x16xf32, #tpu.memory_space<vmem>>, %arg4: memref<8x16xf32, #tpu.memory_space<vmem>>, %arg5: memref<1x1x64xf32, #tpu.memory_space<vmem>>, %arg6: memref<1x1x64xf32, #tpu.memory_space<vmem>>, %arg7: memref<1x64x64xbf16, #tpu.memory_space<vmem>>, %arg8: memref<1x64x32xbf16, #tpu.memory_space<vmem>>, %arg9: memref<1x64x32xbf16, #tpu.memory_space<vmem>>, %arg10: memref<1x64x64xbf16, #tpu.memory_space<vmem>>, %arg11: memref<1x64x128xbf16, #tpu.memory_space<vmem>>, %arg12: memref<1x64x128xbf16, #tpu.memory_space<vmem>>, %arg13: memref<1x128x64xbf16, #tpu.memory_space<vmem>>, %arg14: memref<16x64xf32, #tpu.memory_space<vmem>>, %arg15: memref<16x64xbf16, #tpu.memory_space<vmem>>, %arg16: memref<16x64xbf16, #tpu.memory_space<vmem>>) attributes {dimension_semantics = [#tpu.dimension_semantics<arbitrary>, #tpu.dimension_semantics<arbitrary>], iteration_bounds = array<i64: 2, 1>, scalar_prefetch = 0 : i64, scratch_operands = 2 : i64, tpu.core_type = #tpu.core_type<tc>, window_params = [{pipeline_mode = #tpu.pipeline_mode<synchronous>, transform_indices = @transform_0, window_bounds = array<i64: 16, 64>}, {pipeline_mode = #tpu.pipeline_mode<synchronous>, transform_indices = @transform_1, window_bounds = array<i64: 8, 16>}, {pipeline_mode = #tpu.pipeline_mode<synchronous>, transform_indices = @transform_2, window_bounds = array<i64: 8, 16>}, {transform_indices = @transform_3, window_bounds = array<i64: 1, 1, 64>}, {transform_indices = @transform_4, window_bounds = array<i64: 1, 1, 64>}, {transform_indices = @transform_5, window_bounds = array<i64: 1, 64, 64>}, {transform_indices = @transform_6, window_bounds = array<i64: 1, 64, 32>}, {transform_indices = @transform_7, window_bounds = array<i64: 1, 64, 32>}, {transform_indices = @transform_8, window_bounds = array<i64: 1, 64, 64>}, {transform_indices = @transform_9, window_bounds = array<i64: 1, 64, 128>}, {transform_indices = @transform_10, window_bounds = array<i64: 1, 64, 128>}, {transform_indices = @transform_11, window_bounds = array<i64: 1, 128, 64>}, {pipeline_mode = #tpu.pipeline_mode<synchronous>, transform_indices = @transform_12, window_bounds = array<i64: 16, 64>}]} {
    %c0_i32 = arith.constant 0 : i32
    %0 = arith.cmpi eq, %arg0, %c0_i32 : i32
    %c0_i32_0 = arith.constant 0 : i32
    %1 = arith.cmpi eq, %arg1, %c0_i32_0 : i32
    %2 = arith.andi %0, %1 : i1
    %3 = arith.extui %2 : i1 to i32
    %c0_i32_1 = arith.constant 0 : i32
    %4 = arith.cmpi ne, %3, %c0_i32_1 : i32
    scf.if %4 {
      %c0_21 = arith.constant 0 : index
      %c0_22 = arith.constant 0 : index
      %29 = vector.load %arg2[%c0_21, %c0_22] : memref<16x64xf32, #tpu.memory_space<vmem>>, vector<16x64xf32>
      %c0_23 = arith.constant 0 : index
      %c0_24 = arith.constant 0 : index
      %30 = vector.load %arg14[%c0_23, %c0_24] : memref<16x64xf32, #tpu.memory_space<vmem>>, vector<16x64xf32>
      tpu.vector_store %arg14[%c0_23, %c0_24], %29 {strides = array<i32>} : memref<16x64xf32, #tpu.memory_space<vmem>>, vector<16x64xf32>,
    } else {
    }
    %c0_i32_2 = arith.constant 0 : i32
    %5 = arith.cmpi eq, %arg1, %c0_i32_2 : i32
    %6 = arith.extui %5 : i1 to i32
    %c0_i32_3 = arith.constant 0 : i32
    %7 = arith.cmpi ne, %6, %c0_i32_3 : i32
    scf.if %7 {
      %c0_21 = arith.constant 0 : index
      %c0_22 = arith.constant 0 : index
      %29 = vector.load %arg14[%c0_21, %c0_22] : memref<16x64xf32, #tpu.memory_space<vmem>>, vector<16x64xf32>
      %30 = arith.mulf %29, %29 : vector<16x64xf32>
      %cst_23 = arith.constant dense<0.000000e+00> : vector<16xf32>
      %31 = vector.multi_reduction <add>, %30, %cst_23 [1] : vector<16x64xf32> to vector<16xf32>
      %32 = vector.shape_cast %31 : vector<16xf32> to vector<16x1xf32>
      %cst_24 = arith.constant 6.400000e+01 : f32
      %33 = vector.broadcast %cst_24 : f32 to vector<16x1xf32>
      %34 = arith.divf %32, %33 : vector<16x1xf32>
      %cst_25 = arith.constant 9.99999974E-6 : f32
      %35 = vector.broadcast %cst_25 : f32 to vector<16x1xf32>
      %36 = arith.addf %34, %35 : vector<16x1xf32>
      %37 = math.rsqrt %36 : vector<16x1xf32>
      %38 = vector.broadcast %37 : vector<16x1xf32> to vector<16x64xf32>
      %39 = arith.mulf %29, %38 : vector<16x64xf32>
      %c0_26 = arith.constant 0 : index
      %c0_27 = arith.constant 0 : index
      %c0_28 = arith.constant 0 : index
      %40 = vector.load %arg5[%c0_26, %c0_27, %c0_28] : memref<1x1x64xf32, #tpu.memory_space<vmem>>, vector<1x1x64xf32>
      %41 = vector.shape_cast %40 : vector<1x1x64xf32> to vector<1x64xf32>
      %42 = vector.broadcast %41 : vector<1x64xf32> to vector<16x64xf32>
      %43 = arith.mulf %39, %42 : vector<16x64xf32>
      %44 = arith.truncf %43 : vector<16x64xf32> to vector<16x64xbf16>
      %c0_29 = arith.constant 0 : index
      %c0_30 = arith.constant 0 : index
      %c0_31 = arith.constant 0 : index
      %45 = vector.load %arg7[%c0_29, %c0_30, %c0_31] : memref<1x64x64xbf16, #tpu.memory_space<vmem>>, vector<1x64x64xbf16>
      %46 = vector.shape_cast %45 : vector<1x64x64xbf16> to vector<64x64xbf16>
      %cst_32 = arith.constant dense<0.000000e+00> : vector<16x64xf32>
      %47 = tpu.matmul %44, %46, %cst_32 {dimension_numbers = #tpu.dot_dimension_numbers<[1], [0], [0], [1], [0, 0, 1, 1], [], []>} : vector<16x64xbf16>, vector<64x64xbf16>, vector<16x64xf32> -> vector<16x64xf32>
      %c0_33 = arith.constant 0 : index
      %c0_34 = arith.constant 0 : index
      %c0_35 = arith.constant 0 : index
      %48 = vector.load %arg8[%c0_33, %c0_34, %c0_35] : memref<1x64x32xbf16, #tpu.memory_space<vmem>>, vector<1x64x32xbf16>
      %49 = vector.shape_cast %48 : vector<1x64x32xbf16> to vector<64x32xbf16>
      %cst_36 = arith.constant dense<0.000000e+00> : vector<16x32xf32>
      %50 = tpu.matmul %44, %49, %cst_36 {dimension_numbers = #tpu.dot_dimension_numbers<[1], [0], [0], [1], [0, 0, 1, 1], [], []>} : vector<16x64xbf16>, vector<64x32xbf16>, vector<16x32xf32> -> vector<16x32xf32>
      %c0_37 = arith.constant 0 : index
      %c0_38 = arith.constant 0 : index
      %c0_39 = arith.constant 0 : index
      %51 = vector.load %arg9[%c0_37, %c0_38, %c0_39] : memref<1x64x32xbf16, #tpu.memory_space<vmem>>, vector<1x64x32xbf16>
      %52 = vector.shape_cast %51 : vector<1x64x32xbf16> to vector<64x32xbf16>
      %cst_40 = arith.constant dense<0.000000e+00> : vector<16x32xf32>
      %53 = tpu.matmul %44, %52, %cst_40 {dimension_numbers = #tpu.dot_dimension_numbers<[1], [0], [0], [1], [0, 0, 1, 1], [], []>} : vector<16x64xbf16>, vector<64x32xbf16>, vector<16x32xf32> -> vector<16x32xf32>
      %c0_41 = arith.constant 0 : index
      %c0_42 = arith.constant 0 : index
      %54 = vector.load %arg3[%c0_41, %c0_42] : memref<8x16xf32, #tpu.memory_space<vmem>>, vector<8x16xf32>
      %c0_43 = arith.constant 0 : index
      %c0_44 = arith.constant 0 : index
      %55 = vector.load %arg4[%c0_43, %c0_44] : memref<8x16xf32, #tpu.memory_space<vmem>>, vector<8x16xf32>
      %56 = tpu.iota {dimensions = array<i32: 0>} : vector<8x8xi32>
      %57 = tpu.iota {dimensions = array<i32: 1>} : vector<8x8xi32>
      %58 = arith.cmpi sle, %57, %56 : vector<8x8xi32>
      %59 = vector.extract_strided_slice %50 {offsets = [0, 0], sizes = [8, 16], strides = [1, 1]} : vector<16x32xf32> to vector<8x16xf32>
      %60 = vector.extract_strided_slice %59 {offsets = [0, 8], sizes = [8, 8], strides = [1, 1]} : vector<8x16xf32> to vector<8x8xf32>
      %cst_45 = arith.constant 0.000000e+00 : f32
      %61 = vector.broadcast %cst_45 : f32 to vector<8x8xf32>
      %62 = arith.subf %61, %60 : vector<8x8xf32>
      %63 = vector.extract_strided_slice %59 {offsets = [0, 0], sizes = [8, 8], strides = [1, 1]} : vector<8x16xf32> to vector<8x8xf32>
      %64 = tpu.concatenate %62, %63 in 1 : vector<8x8xf32>, vector<8x8xf32> -> vector<8x16xf32>
      %65 = arith.mulf %59, %54 : vector<8x16xf32>
      %66 = arith.mulf %64, %55 : vector<8x16xf32>
      %67 = arith.addf %65, %66 : vector<8x16xf32>
      %68 = vector.extract_strided_slice %53 {offsets = [0, 0], sizes = [8, 16], strides = [1, 1]} : vector<16x32xf32> to vector<8x16xf32>
      %69 = arith.truncf %68 : vector<8x16xf32> to vector<8x16xbf16>
      %70 = vector.extract_strided_slice %47 {offsets = [0, 0], sizes = [8, 16], strides = [1, 1]} : vector<16x64xf32> to vector<8x16xf32>
      %71 = vector.extract_strided_slice %70 {offsets = [0, 8], sizes = [8, 8], strides = [1, 1]} : vector<8x16xf32> to vector<8x8xf32>
      %cst_46 = arith.constant 0.000000e+00 : f32
      %72 = vector.broadcast %cst_46 : f32 to vector<8x8xf32>
      %73 = arith.subf %72, %71 : vector<8x8xf32>
      %74 = vector.extract_strided_slice %70 {offsets = [0, 0], sizes = [8, 8], strides = [1, 1]} : vector<8x16xf32> to vector<8x8xf32>
      %75 = tpu.concatenate %73, %74 in 1 : vector<8x8xf32>, vector<8x8xf32> -> vector<8x16xf32>
      %76 = arith.mulf %70, %54 : vector<8x16xf32>
      %77 = arith.mulf %75, %55 : vector<8x16xf32>
      %78 = arith.addf %76, %77 : vector<8x16xf32>
      %cst_47 = arith.constant dense<0.000000e+00> : vector<8x8xf32>
      %79 = tpu.matmul %78, %67, %cst_47 {dimension_numbers = #tpu.dot_dimension_numbers<[1], [1], [0], [0], [0, 0, 1, 0], [], []>} : vector<8x16xf32>, vector<8x16xf32>, vector<8x8xf32> -> vector<8x8xf32>
      %cst_48 = arith.constant 2.500000e-01 : f32
      %80 = vector.broadcast %cst_48 : f32 to vector<8x8xf32>
      %81 = arith.mulf %79, %80 : vector<8x8xf32>
      %cst_49 = arith.constant -1.000000e+30 : f32
      %82 = vector.broadcast %cst_49 : f32 to vector<8x8xf32>
      %83 = arith.select %58, %81, %82 : vector<8x8xi1>, vector<8x8xf32>
      %cst_50 = arith.constant dense<0xFF800000> : vector<8xf32>
      %84 = vector.multi_reduction <maximumf>, %83, %cst_50 [1] : vector<8x8xf32> to vector<8xf32>
      %85 = vector.shape_cast %84 : vector<8xf32> to vector<8x1xf32>
      %86 = vector.broadcast %85 : vector<8x1xf32> to vector<8x8xf32>
      %87 = arith.subf %83, %86 : vector<8x8xf32>
      %88 = math.exp %87 : vector<8x8xf32>
      %cst_51 = arith.constant dense<0.000000e+00> : vector<8xf32>
      %89 = vector.multi_reduction <add>, %88, %cst_51 [1] : vector<8x8xf32> to vector<8xf32>
      %90 = vector.shape_cast %89 : vector<8xf32> to vector<8x1xf32>
      %91 = tpu.reciprocal %90 {approx = true} : vector<8x1xf32> -> vector<8x1xf32>
      %92 = vector.broadcast %91 : vector<8x1xf32> to vector<8x8xf32>
      %93 = arith.mulf %88, %92 : vector<8x8xf32>
      %94 = arith.truncf %93 : vector<8x8xf32> to vector<8x8xbf16>
      %cst_52 = arith.constant dense<0.000000e+00> : vector<8x16xf32>
      %95 = tpu.matmul %94, %69, %cst_52 {dimension_numbers = #tpu.dot_dimension_numbers<[1], [0], [0], [1], [0, 0, 1, 1], [], []>} : vector<8x8xbf16>, vector<8x16xbf16>, vector<8x16xf32> -> vector<8x16xf32>
      %96 = arith.truncf %95 : vector<8x16xf32> to vector<8x16xbf16>
      %c0_53 = arith.constant 0 : index
      %c0_54 = arith.constant 0 : index
      %97 = vector.load %arg15[%c0_53, %c0_54] : memref<16x64xbf16, #tpu.memory_space<vmem>>, vector<8x16xbf16>
      tpu.vector_store %arg15[%c0_53, %c0_54], %96 {strides = array<i32>} : memref<16x64xbf16, #tpu.memory_space<vmem>>, vector<8x16xbf16>,
      %98 = vector.extract_strided_slice %47 {offsets = [0, 16], sizes = [8, 16], strides = [1, 1]} : vector<16x64xf32> to vector<8x16xf32>
      %99 = vector.extract_strided_slice %98 {offsets = [0, 8], sizes = [8, 8], strides = [1, 1]} : vector<8x16xf32> to vector<8x8xf32>
      %cst_55 = arith.constant 0.000000e+00 : f32
      %100 = vector.broadcast %cst_55 : f32 to vector<8x8xf32>
      %101 = arith.subf %100, %99 : vector<8x8xf32>
      %102 = vector.extract_strided_slice %98 {offsets = [0, 0], sizes = [8, 8], strides = [1, 1]} : vector<8x16xf32> to vector<8x8xf32>
      %103 = tpu.concatenate %101, %102 in 1 : vector<8x8xf32>, vector<8x8xf32> -> vector<8x16xf32>
      %104 = arith.mulf %98, %54 : vector<8x16xf32>
      %105 = arith.mulf %103, %55 : vector<8x16xf32>
      %106 = arith.addf %104, %105 : vector<8x16xf32>
      %cst_56 = arith.constant dense<0.000000e+00> : vector<8x8xf32>
      %107 = tpu.matmul %106, %67, %cst_56 {dimension_numbers = #tpu.dot_dimension_numbers<[1], [1], [0], [0], [0, 0, 1, 0], [], []>} : vector<8x16xf32>, vector<8x16xf32>, vector<8x8xf32> -> vector<8x8xf32>
      %cst_57 = arith.constant 2.500000e-01 : f32
      %108 = vector.broadcast %cst_57 : f32 to vector<8x8xf32>
      %109 = arith.mulf %107, %108 : vector<8x8xf32>
      %cst_58 = arith.constant -1.000000e+30 : f32
      %110 = vector.broadcast %cst_58 : f32 to vector<8x8xf32>
      %111 = arith.select %58, %109, %110 : vector<8x8xi1>, vector<8x8xf32>
      %cst_59 = arith.constant dense<0xFF800000> : vector<8xf32>
      %112 = vector.multi_reduction <maximumf>, %111, %cst_59 [1] : vector<8x8xf32> to vector<8xf32>
      %113 = vector.shape_cast %112 : vector<8xf32> to vector<8x1xf32>
      %114 = vector.broadcast %113 : vector<8x1xf32> to vector<8x8xf32>
      %115 = arith.subf %111, %114 : vector<8x8xf32>
      %116 = math.exp %115 : vector<8x8xf32>
      %cst_60 = arith.constant dense<0.000000e+00> : vector<8xf32>
      %117 = vector.multi_reduction <add>, %116, %cst_60 [1] : vector<8x8xf32> to vector<8xf32>
      %118 = vector.shape_cast %117 : vector<8xf32> to vector<8x1xf32>
      %119 = tpu.reciprocal %118 {approx = true} : vector<8x1xf32> -> vector<8x1xf32>
      %120 = vector.broadcast %119 : vector<8x1xf32> to vector<8x8xf32>
      %121 = arith.mulf %116, %120 : vector<8x8xf32>
      %122 = arith.truncf %121 : vector<8x8xf32> to vector<8x8xbf16>
      %cst_61 = arith.constant dense<0.000000e+00> : vector<8x16xf32>
      %123 = tpu.matmul %122, %69, %cst_61 {dimension_numbers = #tpu.dot_dimension_numbers<[1], [0], [0], [1], [0, 0, 1, 1], [], []>} : vector<8x8xbf16>, vector<8x16xbf16>, vector<8x16xf32> -> vector<8x16xf32>
      %124 = arith.truncf %123 : vector<8x16xf32> to vector<8x16xbf16>
      %c0_62 = arith.constant 0 : index
      %c16 = arith.constant 16 : index
      %125 = vector.load %arg15[%c0_62, %c16] : memref<16x64xbf16, #tpu.memory_space<vmem>>, vector<8x16xbf16>
      tpu.vector_store %arg15[%c0_62, %c16], %124 {strides = array<i32>} : memref<16x64xbf16, #tpu.memory_space<vmem>>, vector<8x16xbf16>,
      %126 = vector.extract_strided_slice %50 {offsets = [0, 16], sizes = [8, 16], strides = [1, 1]} : vector<16x32xf32> to vector<8x16xf32>
      %127 = vector.extract_strided_slice %126 {offsets = [0, 8], sizes = [8, 8], strides = [1, 1]} : vector<8x16xf32> to vector<8x8xf32>
      %cst_63 = arith.constant 0.000000e+00 : f32
      %128 = vector.broadcast %cst_63 : f32 to vector<8x8xf32>
      %129 = arith.subf %128, %127 : vector<8x8xf32>
      %130 = vector.extract_strided_slice %126 {offsets = [0, 0], sizes = [8, 8], strides = [1, 1]} : vector<8x16xf32> to vector<8x8xf32>
      %131 = tpu.concatenate %129, %130 in 1 : vector<8x8xf32>, vector<8x8xf32> -> vector<8x16xf32>
      %132 = arith.mulf %126, %54 : vector<8x16xf32>
      %133 = arith.mulf %131, %55 : vector<8x16xf32>
      %134 = arith.addf %132, %133 : vector<8x16xf32>
      %135 = vector.extract_strided_slice %53 {offsets = [0, 16], sizes = [8, 16], strides = [1, 1]} : vector<16x32xf32> to vector<8x16xf32>
      %136 = arith.truncf %135 : vector<8x16xf32> to vector<8x16xbf16>
      %137 = vector.extract_strided_slice %47 {offsets = [0, 32], sizes = [8, 16], strides = [1, 1]} : vector<16x64xf32> to vector<8x16xf32>
      %138 = vector.extract_strided_slice %137 {offsets = [0, 8], sizes = [8, 8], strides = [1, 1]} : vector<8x16xf32> to vector<8x8xf32>
      %cst_64 = arith.constant 0.000000e+00 : f32
      %139 = vector.broadcast %cst_64 : f32 to vector<8x8xf32>
      %140 = arith.subf %139, %138 : vector<8x8xf32>
      %141 = vector.extract_strided_slice %137 {offsets = [0, 0], sizes = [8, 8], strides = [1, 1]} : vector<8x16xf32> to vector<8x8xf32>
      %142 = tpu.concatenate %140, %141 in 1 : vector<8x8xf32>, vector<8x8xf32> -> vector<8x16xf32>
      %143 = arith.mulf %137, %54 : vector<8x16xf32>
      %144 = arith.mulf %142, %55 : vector<8x16xf32>
      %145 = arith.addf %143, %144 : vector<8x16xf32>
      %cst_65 = arith.constant dense<0.000000e+00> : vector<8x8xf32>
      %146 = tpu.matmul %145, %134, %cst_65 {dimension_numbers = #tpu.dot_dimension_numbers<[1], [1], [0], [0], [0, 0, 1, 0], [], []>} : vector<8x16xf32>, vector<8x16xf32>, vector<8x8xf32> -> vector<8x8xf32>
      %cst_66 = arith.constant 2.500000e-01 : f32
      %147 = vector.broadcast %cst_66 : f32 to vector<8x8xf32>
      %148 = arith.mulf %146, %147 : vector<8x8xf32>
      %cst_67 = arith.constant -1.000000e+30 : f32
      %149 = vector.broadcast %cst_67 : f32 to vector<8x8xf32>
      %150 = arith.select %58, %148, %149 : vector<8x8xi1>, vector<8x8xf32>
      %cst_68 = arith.constant dense<0xFF800000> : vector<8xf32>
      %151 = vector.multi_reduction <maximumf>, %150, %cst_68 [1] : vector<8x8xf32> to vector<8xf32>
      %152 = vector.shape_cast %151 : vector<8xf32> to vector<8x1xf32>
      %153 = vector.broadcast %152 : vector<8x1xf32> to vector<8x8xf32>
      %154 = arith.subf %150, %153 : vector<8x8xf32>
      %155 = math.exp %154 : vector<8x8xf32>
      %cst_69 = arith.constant dense<0.000000e+00> : vector<8xf32>
      %156 = vector.multi_reduction <add>, %155, %cst_69 [1] : vector<8x8xf32> to vector<8xf32>
      %157 = vector.shape_cast %156 : vector<8xf32> to vector<8x1xf32>
      %158 = tpu.reciprocal %157 {approx = true} : vector<8x1xf32> -> vector<8x1xf32>
      %159 = vector.broadcast %158 : vector<8x1xf32> to vector<8x8xf32>
      %160 = arith.mulf %155, %159 : vector<8x8xf32>
      %161 = arith.truncf %160 : vector<8x8xf32> to vector<8x8xbf16>
      %cst_70 = arith.constant dense<0.000000e+00> : vector<8x16xf32>
      %162 = tpu.matmul %161, %136, %cst_70 {dimension_numbers = #tpu.dot_dimension_numbers<[1], [0], [0], [1], [0, 0, 1, 1], [], []>} : vector<8x8xbf16>, vector<8x16xbf16>, vector<8x16xf32> -> vector<8x16xf32>
      %163 = arith.truncf %162 : vector<8x16xf32> to vector<8x16xbf16>
      %c0_71 = arith.constant 0 : index
      %c32 = arith.constant 32 : index
      %164 = vector.load %arg15[%c0_71, %c32] : memref<16x64xbf16, #tpu.memory_space<vmem>>, vector<8x16xbf16>
      tpu.vector_store %arg15[%c0_71, %c32], %163 {strides = array<i32>} : memref<16x64xbf16, #tpu.memory_space<vmem>>, vector<8x16xbf16>,
      %165 = vector.extract_strided_slice %47 {offsets = [0, 48], sizes = [8, 16], strides = [1, 1]} : vector<16x64xf32> to vector<8x16xf32>
      %166 = vector.extract_strided_slice %165 {offsets = [0, 8], sizes = [8, 8], strides = [1, 1]} : vector<8x16xf32> to vector<8x8xf32>
      %cst_72 = arith.constant 0.000000e+00 : f32
      %167 = vector.broadcast %cst_72 : f32 to vector<8x8xf32>
      %168 = arith.subf %167, %166 : vector<8x8xf32>
      %169 = vector.extract_strided_slice %165 {offsets = [0, 0], sizes = [8, 8], strides = [1, 1]} : vector<8x16xf32> to vector<8x8xf32>
      %170 = tpu.concatenate %168, %169 in 1 : vector<8x8xf32>, vector<8x8xf32> -> vector<8x16xf32>
      %171 = arith.mulf %165, %54 : vector<8x16xf32>
      %172 = arith.mulf %170, %55 : vector<8x16xf32>
      %173 = arith.addf %171, %172 : vector<8x16xf32>
      %cst_73 = arith.constant dense<0.000000e+00> : vector<8x8xf32>
      %174 = tpu.matmul %173, %134, %cst_73 {dimension_numbers = #tpu.dot_dimension_numbers<[1], [1], [0], [0], [0, 0, 1, 0], [], []>} : vector<8x16xf32>, vector<8x16xf32>, vector<8x8xf32> -> vector<8x8xf32>
      %cst_74 = arith.constant 2.500000e-01 : f32
      %175 = vector.broadcast %cst_74 : f32 to vector<8x8xf32>
      %176 = arith.mulf %174, %175 : vector<8x8xf32>
      %cst_75 = arith.constant -1.000000e+30 : f32
      %177 = vector.broadcast %cst_75 : f32 to vector<8x8xf32>
      %178 = arith.select %58, %176, %177 : vector<8x8xi1>, vector<8x8xf32>
      %cst_76 = arith.constant dense<0xFF800000> : vector<8xf32>
      %179 = vector.multi_reduction <maximumf>, %178, %cst_76 [1] : vector<8x8xf32> to vector<8xf32>
      %180 = vector.shape_cast %179 : vector<8xf32> to vector<8x1xf32>
      %181 = vector.broadcast %180 : vector<8x1xf32> to vector<8x8xf32>
      %182 = arith.subf %178, %181 : vector<8x8xf32>
      %183 = math.exp %182 : vector<8x8xf32>
      %cst_77 = arith.constant dense<0.000000e+00> : vector<8xf32>
      %184 = vector.multi_reduction <add>, %183, %cst_77 [1] : vector<8x8xf32> to vector<8xf32>
      %185 = vector.shape_cast %184 : vector<8xf32> to vector<8x1xf32>
      %186 = tpu.reciprocal %185 {approx = true} : vector<8x1xf32> -> vector<8x1xf32>
      %187 = vector.broadcast %186 : vector<8x1xf32> to vector<8x8xf32>
      %188 = arith.mulf %183, %187 : vector<8x8xf32>
      %189 = arith.truncf %188 : vector<8x8xf32> to vector<8x8xbf16>
      %cst_78 = arith.constant dense<0.000000e+00> : vector<8x16xf32>
      %190 = tpu.matmul %189, %136, %cst_78 {dimension_numbers = #tpu.dot_dimension_numbers<[1], [0], [0], [1], [0, 0, 1, 1], [], []>} : vector<8x8xbf16>, vector<8x16xbf16>, vector<8x16xf32> -> vector<8x16xf32>
      %191 = arith.truncf %190 : vector<8x16xf32> to vector<8x16xbf16>
      %c0_79 = arith.constant 0 : index
      %c48 = arith.constant 48 : index
      %192 = vector.load %arg15[%c0_79, %c48] : memref<16x64xbf16, #tpu.memory_space<vmem>>, vector<8x16xbf16>
      tpu.vector_store %arg15[%c0_79, %c48], %191 {strides = array<i32>} : memref<16x64xbf16, #tpu.memory_space<vmem>>, vector<8x16xbf16>,
      %193 = vector.extract_strided_slice %50 {offsets = [8, 0], sizes = [8, 16], strides = [1, 1]} : vector<16x32xf32> to vector<8x16xf32>
      %194 = vector.extract_strided_slice %193 {offsets = [0, 8], sizes = [8, 8], strides = [1, 1]} : vector<8x16xf32> to vector<8x8xf32>
      %cst_80 = arith.constant 0.000000e+00 : f32
      %195 = vector.broadcast %cst_80 : f32 to vector<8x8xf32>
      %196 = arith.subf %195, %194 : vector<8x8xf32>
      %197 = vector.extract_strided_slice %193 {offsets = [0, 0], sizes = [8, 8], strides = [1, 1]} : vector<8x16xf32> to vector<8x8xf32>
      %198 = tpu.concatenate %196, %197 in 1 : vector<8x8xf32>, vector<8x8xf32> -> vector<8x16xf32>
      %199 = arith.mulf %193, %54 : vector<8x16xf32>
      %200 = arith.mulf %198, %55 : vector<8x16xf32>
      %201 = arith.addf %199, %200 : vector<8x16xf32>
      %202 = vector.extract_strided_slice %53 {offsets = [8, 0], sizes = [8, 16], strides = [1, 1]} : vector<16x32xf32> to vector<8x16xf32>
      %203 = arith.truncf %202 : vector<8x16xf32> to vector<8x16xbf16>
      %204 = vector.extract_strided_slice %47 {offsets = [8, 0], sizes = [8, 16], strides = [1, 1]} : vector<16x64xf32> to vector<8x16xf32>
      %205 = vector.extract_strided_slice %204 {offsets = [0, 8], sizes = [8, 8], strides = [1, 1]} : vector<8x16xf32> to vector<8x8xf32>
      %cst_81 = arith.constant 0.000000e+00 : f32
      %206 = vector.broadcast %cst_81 : f32 to vector<8x8xf32>
      %207 = arith.subf %206, %205 : vector<8x8xf32>
      %208 = vector.extract_strided_slice %204 {offsets = [0, 0], sizes = [8, 8], strides = [1, 1]} : vector<8x16xf32> to vector<8x8xf32>
      %209 = tpu.concatenate %207, %208 in 1 : vector<8x8xf32>, vector<8x8xf32> -> vector<8x16xf32>
      %210 = arith.mulf %204, %54 : vector<8x16xf32>
      %211 = arith.mulf %209, %55 : vector<8x16xf32>
      %212 = arith.addf %210, %211 : vector<8x16xf32>
      %cst_82 = arith.constant dense<0.000000e+00> : vector<8x8xf32>
      %213 = tpu.matmul %212, %201, %cst_82 {dimension_numbers = #tpu.dot_dimension_numbers<[1], [1], [0], [0], [0, 0, 1, 0], [], []>} : vector<8x16xf32>, vector<8x16xf32>, vector<8x8xf32> -> vector<8x8xf32>
      %cst_83 = arith.constant 2.500000e-01 : f32
      %214 = vector.broadcast %cst_83 : f32 to vector<8x8xf32>
      %215 = arith.mulf %213, %214 : vector<8x8xf32>
      %cst_84 = arith.constant -1.000000e+30 : f32
      %216 = vector.broadcast %cst_84 : f32 to vector<8x8xf32>
      %217 = arith.select %58, %215, %216 : vector<8x8xi1>, vector<8x8xf32>
      %cst_85 = arith.constant dense<0xFF800000> : vector<8xf32>
      %218 = vector.multi_reduction <maximumf>, %217, %cst_85 [1] : vector<8x8xf32> to vector<8xf32>
      %219 = vector.shape_cast %218 : vector<8xf32> to vector<8x1xf32>
      %220 = vector.broadcast %219 : vector<8x1xf32> to vector<8x8xf32>
      %221 = arith.subf %217, %220 : vector<8x8xf32>
      %222 = math.exp %221 : vector<8x8xf32>
      %cst_86 = arith.constant dense<0.000000e+00> : vector<8xf32>
      %223 = vector.multi_reduction <add>, %222, %cst_86 [1] : vector<8x8xf32> to vector<8xf32>
      %224 = vector.shape_cast %223 : vector<8xf32> to vector<8x1xf32>
      %225 = tpu.reciprocal %224 {approx = true} : vector<8x1xf32> -> vector<8x1xf32>
      %226 = vector.broadcast %225 : vector<8x1xf32> to vector<8x8xf32>
      %227 = arith.mulf %222, %226 : vector<8x8xf32>
      %228 = arith.truncf %227 : vector<8x8xf32> to vector<8x8xbf16>
      %cst_87 = arith.constant dense<0.000000e+00> : vector<8x16xf32>
      %229 = tpu.matmul %228, %203, %cst_87 {dimension_numbers = #tpu.dot_dimension_numbers<[1], [0], [0], [1], [0, 0, 1, 1], [], []>} : vector<8x8xbf16>, vector<8x16xbf16>, vector<8x16xf32> -> vector<8x16xf32>
      %230 = arith.truncf %229 : vector<8x16xf32> to vector<8x16xbf16>
      %c8 = arith.constant 8 : index
      %c0_88 = arith.constant 0 : index
      %231 = vector.load %arg15[%c8, %c0_88] : memref<16x64xbf16, #tpu.memory_space<vmem>>, vector<8x16xbf16>
      tpu.vector_store %arg15[%c8, %c0_88], %230 {strides = array<i32>} : memref<16x64xbf16, #tpu.memory_space<vmem>>, vector<8x16xbf16>,
      %232 = vector.extract_strided_slice %47 {offsets = [8, 16], sizes = [8, 16], strides = [1, 1]} : vector<16x64xf32> to vector<8x16xf32>
      %233 = vector.extract_strided_slice %232 {offsets = [0, 8], sizes = [8, 8], strides = [1, 1]} : vector<8x16xf32> to vector<8x8xf32>
      %cst_89 = arith.constant 0.000000e+00 : f32
      %234 = vector.broadcast %cst_89 : f32 to vector<8x8xf32>
      %235 = arith.subf %234, %233 : vector<8x8xf32>
      %236 = vector.extract_strided_slice %232 {offsets = [0, 0], sizes = [8, 8], strides = [1, 1]} : vector<8x16xf32> to vector<8x8xf32>
      %237 = tpu.concatenate %235, %236 in 1 : vector<8x8xf32>, vector<8x8xf32> -> vector<8x16xf32>
      %238 = arith.mulf %232, %54 : vector<8x16xf32>
      %239 = arith.mulf %237, %55 : vector<8x16xf32>
      %240 = arith.addf %238, %239 : vector<8x16xf32>
      %cst_90 = arith.constant dense<0.000000e+00> : vector<8x8xf32>
      %241 = tpu.matmul %240, %201, %cst_90 {dimension_numbers = #tpu.dot_dimension_numbers<[1], [1], [0], [0], [0, 0, 1, 0], [], []>} : vector<8x16xf32>, vector<8x16xf32>, vector<8x8xf32> -> vector<8x8xf32>
      %cst_91 = arith.constant 2.500000e-01 : f32
      %242 = vector.broadcast %cst_91 : f32 to vector<8x8xf32>
      %243 = arith.mulf %241, %242 : vector<8x8xf32>
      %cst_92 = arith.constant -1.000000e+30 : f32
      %244 = vector.broadcast %cst_92 : f32 to vector<8x8xf32>
      %245 = arith.select %58, %243, %244 : vector<8x8xi1>, vector<8x8xf32>
      %cst_93 = arith.constant dense<0xFF800000> : vector<8xf32>
      %246 = vector.multi_reduction <maximumf>, %245, %cst_93 [1] : vector<8x8xf32> to vector<8xf32>
      %247 = vector.shape_cast %246 : vector<8xf32> to vector<8x1xf32>
      %248 = vector.broadcast %247 : vector<8x1xf32> to vector<8x8xf32>
      %249 = arith.subf %245, %248 : vector<8x8xf32>
      %250 = math.exp %249 : vector<8x8xf32>
      %cst_94 = arith.constant dense<0.000000e+00> : vector<8xf32>
      %251 = vector.multi_reduction <add>, %250, %cst_94 [1] : vector<8x8xf32> to vector<8xf32>
      %252 = vector.shape_cast %251 : vector<8xf32> to vector<8x1xf32>
      %253 = tpu.reciprocal %252 {approx = true} : vector<8x1xf32> -> vector<8x1xf32>
      %254 = vector.broadcast %253 : vector<8x1xf32> to vector<8x8xf32>
      %255 = arith.mulf %250, %254 : vector<8x8xf32>
      %256 = arith.truncf %255 : vector<8x8xf32> to vector<8x8xbf16>
      %cst_95 = arith.constant dense<0.000000e+00> : vector<8x16xf32>
      %257 = tpu.matmul %256, %203, %cst_95 {dimension_numbers = #tpu.dot_dimension_numbers<[1], [0], [0], [1], [0, 0, 1, 1], [], []>} : vector<8x8xbf16>, vector<8x16xbf16>, vector<8x16xf32> -> vector<8x16xf32>
      %258 = arith.truncf %257 : vector<8x16xf32> to vector<8x16xbf16>
      %c8_96 = arith.constant 8 : index
      %c16_97 = arith.constant 16 : index
      %259 = vector.load %arg15[%c8_96, %c16_97] : memref<16x64xbf16, #tpu.memory_space<vmem>>, vector<8x16xbf16>
      tpu.vector_store %arg15[%c8_96, %c16_97], %258 {strides = array<i32>} : memref<16x64xbf16, #tpu.memory_space<vmem>>, vector<8x16xbf16>,
      %260 = vector.extract_strided_slice %50 {offsets = [8, 16], sizes = [8, 16], strides = [1, 1]} : vector<16x32xf32> to vector<8x16xf32>
      %261 = vector.extract_strided_slice %260 {offsets = [0, 8], sizes = [8, 8], strides = [1, 1]} : vector<8x16xf32> to vector<8x8xf32>
      %cst_98 = arith.constant 0.000000e+00 : f32
      %262 = vector.broadcast %cst_98 : f32 to vector<8x8xf32>
      %263 = arith.subf %262, %261 : vector<8x8xf32>
      %264 = vector.extract_strided_slice %260 {offsets = [0, 0], sizes = [8, 8], strides = [1, 1]} : vector<8x16xf32> to vector<8x8xf32>
      %265 = tpu.concatenate %263, %264 in 1 : vector<8x8xf32>, vector<8x8xf32> -> vector<8x16xf32>
      %266 = arith.mulf %260, %54 : vector<8x16xf32>
      %267 = arith.mulf %265, %55 : vector<8x16xf32>
      %268 = arith.addf %266, %267 : vector<8x16xf32>
      %269 = vector.extract_strided_slice %53 {offsets = [8, 16], sizes = [8, 16], strides = [1, 1]} : vector<16x32xf32> to vector<8x16xf32>
      %270 = arith.truncf %269 : vector<8x16xf32> to vector<8x16xbf16>
      %271 = vector.extract_strided_slice %47 {offsets = [8, 32], sizes = [8, 16], strides = [1, 1]} : vector<16x64xf32> to vector<8x16xf32>
      %272 = vector.extract_strided_slice %271 {offsets = [0, 8], sizes = [8, 8], strides = [1, 1]} : vector<8x16xf32> to vector<8x8xf32>
      %cst_99 = arith.constant 0.000000e+00 : f32
      %273 = vector.broadcast %cst_99 : f32 to vector<8x8xf32>
      %274 = arith.subf %273, %272 : vector<8x8xf32>
      %275 = vector.extract_strided_slice %271 {offsets = [0, 0], sizes = [8, 8], strides = [1, 1]} : vector<8x16xf32> to vector<8x8xf32>
      %276 = tpu.concatenate %274, %275 in 1 : vector<8x8xf32>, vector<8x8xf32> -> vector<8x16xf32>
      %277 = arith.mulf %271, %54 : vector<8x16xf32>
      %278 = arith.mulf %276, %55 : vector<8x16xf32>
      %279 = arith.addf %277, %278 : vector<8x16xf32>
      %cst_100 = arith.constant dense<0.000000e+00> : vector<8x8xf32>
      %280 = tpu.matmul %279, %268, %cst_100 {dimension_numbers = #tpu.dot_dimension_numbers<[1], [1], [0], [0], [0, 0, 1, 0], [], []>} : vector<8x16xf32>, vector<8x16xf32>, vector<8x8xf32> -> vector<8x8xf32>
      %cst_101 = arith.constant 2.500000e-01 : f32
      %281 = vector.broadcast %cst_101 : f32 to vector<8x8xf32>
      %282 = arith.mulf %280, %281 : vector<8x8xf32>
      %cst_102 = arith.constant -1.000000e+30 : f32
      %283 = vector.broadcast %cst_102 : f32 to vector<8x8xf32>
      %284 = arith.select %58, %282, %283 : vector<8x8xi1>, vector<8x8xf32>
      %cst_103 = arith.constant dense<0xFF800000> : vector<8xf32>
      %285 = vector.multi_reduction <maximumf>, %284, %cst_103 [1] : vector<8x8xf32> to vector<8xf32>
      %286 = vector.shape_cast %285 : vector<8xf32> to vector<8x1xf32>
      %287 = vector.broadcast %286 : vector<8x1xf32> to vector<8x8xf32>
      %288 = arith.subf %284, %287 : vector<8x8xf32>
      %289 = math.exp %288 : vector<8x8xf32>
      %cst_104 = arith.constant dense<0.000000e+00> : vector<8xf32>
      %290 = vector.multi_reduction <add>, %289, %cst_104 [1] : vector<8x8xf32> to vector<8xf32>
      %291 = vector.shape_cast %290 : vector<8xf32> to vector<8x1xf32>
      %292 = tpu.reciprocal %291 {approx = true} : vector<8x1xf32> -> vector<8x1xf32>
      %293 = vector.broadcast %292 : vector<8x1xf32> to vector<8x8xf32>
      %294 = arith.mulf %289, %293 : vector<8x8xf32>
      %295 = arith.truncf %294 : vector<8x8xf32> to vector<8x8xbf16>
      %cst_105 = arith.constant dense<0.000000e+00> : vector<8x16xf32>
      %296 = tpu.matmul %295, %270, %cst_105 {dimension_numbers = #tpu.dot_dimension_numbers<[1], [0], [0], [1], [0, 0, 1, 1], [], []>} : vector<8x8xbf16>, vector<8x16xbf16>, vector<8x16xf32> -> vector<8x16xf32>
      %297 = arith.truncf %296 : vector<8x16xf32> to vector<8x16xbf16>
      %c8_106 = arith.constant 8 : index
      %c32_107 = arith.constant 32 : index
      %298 = vector.load %arg15[%c8_106, %c32_107] : memref<16x64xbf16, #tpu.memory_space<vmem>>, vector<8x16xbf16>
      tpu.vector_store %arg15[%c8_106, %c32_107], %297 {strides = array<i32>} : memref<16x64xbf16, #tpu.memory_space<vmem>>, vector<8x16xbf16>,
      %299 = vector.extract_strided_slice %47 {offsets = [8, 48], sizes = [8, 16], strides = [1, 1]} : vector<16x64xf32> to vector<8x16xf32>
      %300 = vector.extract_strided_slice %299 {offsets = [0, 8], sizes = [8, 8], strides = [1, 1]} : vector<8x16xf32> to vector<8x8xf32>
      %cst_108 = arith.constant 0.000000e+00 : f32
      %301 = vector.broadcast %cst_108 : f32 to vector<8x8xf32>
      %302 = arith.subf %301, %300 : vector<8x8xf32>
      %303 = vector.extract_strided_slice %299 {offsets = [0, 0], sizes = [8, 8], strides = [1, 1]} : vector<8x16xf32> to vector<8x8xf32>
      %304 = tpu.concatenate %302, %303 in 1 : vector<8x8xf32>, vector<8x8xf32> -> vector<8x16xf32>
      %305 = arith.mulf %299, %54 : vector<8x16xf32>
      %306 = arith.mulf %304, %55 : vector<8x16xf32>
      %307 = arith.addf %305, %306 : vector<8x16xf32>
      %cst_109 = arith.constant dense<0.000000e+00> : vector<8x8xf32>
      %308 = tpu.matmul %307, %268, %cst_109 {dimension_numbers = #tpu.dot_dimension_numbers<[1], [1], [0], [0], [0, 0, 1, 0], [], []>} : vector<8x16xf32>, vector<8x16xf32>, vector<8x8xf32> -> vector<8x8xf32>
      %cst_110 = arith.constant 2.500000e-01 : f32
      %309 = vector.broadcast %cst_110 : f32 to vector<8x8xf32>
      %310 = arith.mulf %308, %309 : vector<8x8xf32>
      %cst_111 = arith.constant -1.000000e+30 : f32
      %311 = vector.broadcast %cst_111 : f32 to vector<8x8xf32>
      %312 = arith.select %58, %310, %311 : vector<8x8xi1>, vector<8x8xf32>
      %cst_112 = arith.constant dense<0xFF800000> : vector<8xf32>
      %313 = vector.multi_reduction <maximumf>, %312, %cst_112 [1] : vector<8x8xf32> to vector<8xf32>
      %314 = vector.shape_cast %313 : vector<8xf32> to vector<8x1xf32>
      %315 = vector.broadcast %314 : vector<8x1xf32> to vector<8x8xf32>
      %316 = arith.subf %312, %315 : vector<8x8xf32>
      %317 = math.exp %316 : vector<8x8xf32>
      %cst_113 = arith.constant dense<0.000000e+00> : vector<8xf32>
      %318 = vector.multi_reduction <add>, %317, %cst_113 [1] : vector<8x8xf32> to vector<8xf32>
      %319 = vector.shape_cast %318 : vector<8xf32> to vector<8x1xf32>
      %320 = tpu.reciprocal %319 {approx = true} : vector<8x1xf32> -> vector<8x1xf32>
      %321 = vector.broadcast %320 : vector<8x1xf32> to vector<8x8xf32>
      %322 = arith.mulf %317, %321 : vector<8x8xf32>
      %323 = arith.truncf %322 : vector<8x8xf32> to vector<8x8xbf16>
      %cst_114 = arith.constant dense<0.000000e+00> : vector<8x16xf32>
      %324 = tpu.matmul %323, %270, %cst_114 {dimension_numbers = #tpu.dot_dimension_numbers<[1], [0], [0], [1], [0, 0, 1, 1], [], []>} : vector<8x8xbf16>, vector<8x16xbf16>, vector<8x16xf32> -> vector<8x16xf32>
      %325 = arith.truncf %324 : vector<8x16xf32> to vector<8x16xbf16>
      %c8_115 = arith.constant 8 : index
      %c48_116 = arith.constant 48 : index
      %326 = vector.load %arg15[%c8_115, %c48_116] : memref<16x64xbf16, #tpu.memory_space<vmem>>, vector<8x16xbf16>
      tpu.vector_store %arg15[%c8_115, %c48_116], %325 {strides = array<i32>} : memref<16x64xbf16, #tpu.memory_space<vmem>>, vector<8x16xbf16>,
      %c0_117 = arith.constant 0 : index
      %c0_118 = arith.constant 0 : index
      %327 = vector.load %arg15[%c0_117, %c0_118] : memref<16x64xbf16, #tpu.memory_space<vmem>>, vector<16x64xbf16>
      %c0_119 = arith.constant 0 : index
      %c0_120 = arith.constant 0 : index
      %c0_121 = arith.constant 0 : index
      %328 = vector.load %arg10[%c0_119, %c0_120, %c0_121] : memref<1x64x64xbf16, #tpu.memory_space<vmem>>, vector<1x64x64xbf16>
      %329 = vector.shape_cast %328 : vector<1x64x64xbf16> to vector<64x64xbf16>
      %cst_122 = arith.constant dense<0.000000e+00> : vector<16x64xf32>
      %330 = tpu.matmul %327, %329, %cst_122 {dimension_numbers = #tpu.dot_dimension_numbers<[1], [0], [0], [1], [0, 0, 1, 1], [], []>} : vector<16x64xbf16>, vector<64x64xbf16>, vector<16x64xf32> -> vector<16x64xf32>
      %331 = arith.addf %29, %330 : vector<16x64xf32>
      %c0_123 = arith.constant 0 : index
      %c0_124 = arith.constant 0 : index
      %332 = vector.load %arg14[%c0_123, %c0_124] : memref<16x64xf32, #tpu.memory_space<vmem>>, vector<16x64xf32>
      tpu.vector_store %arg14[%c0_123, %c0_124], %331 {strides = array<i32>} : memref<16x64xf32, #tpu.memory_space<vmem>>, vector<16x64xf32>,
      %333 = arith.mulf %331, %331 : vector<16x64xf32>
      %cst_125 = arith.constant dense<0.000000e+00> : vector<16xf32>
      %334 = vector.multi_reduction <add>, %333, %cst_125 [1] : vector<16x64xf32> to vector<16xf32>
      %335 = vector.shape_cast %334 : vector<16xf32> to vector<16x1xf32>
      %cst_126 = arith.constant 6.400000e+01 : f32
      %336 = vector.broadcast %cst_126 : f32 to vector<16x1xf32>
      %337 = arith.divf %335, %336 : vector<16x1xf32>
      %cst_127 = arith.constant 9.99999974E-6 : f32
      %338 = vector.broadcast %cst_127 : f32 to vector<16x1xf32>
      %339 = arith.addf %337, %338 : vector<16x1xf32>
      %340 = math.rsqrt %339 : vector<16x1xf32>
      %341 = vector.broadcast %340 : vector<16x1xf32> to vector<16x64xf32>
      %342 = arith.mulf %331, %341 : vector<16x64xf32>
      %c0_128 = arith.constant 0 : index
      %c0_129 = arith.constant 0 : index
      %c0_130 = arith.constant 0 : index
      %343 = vector.load %arg6[%c0_128, %c0_129, %c0_130] : memref<1x1x64xf32, #tpu.memory_space<vmem>>, vector<1x1x64xf32>
      %344 = vector.shape_cast %343 : vector<1x1x64xf32> to vector<1x64xf32>
      %345 = vector.broadcast %344 : vector<1x64xf32> to vector<16x64xf32>
      %346 = arith.mulf %342, %345 : vector<16x64xf32>
      %347 = arith.truncf %346 : vector<16x64xf32> to vector<16x64xbf16>
      %c0_131 = arith.constant 0 : index
      %c0_132 = arith.constant 0 : index
      %348 = vector.load %arg16[%c0_131, %c0_132] : memref<16x64xbf16, #tpu.memory_space<vmem>>, vector<16x64xbf16>
      tpu.vector_store %arg16[%c0_131, %c0_132], %347 {strides = array<i32>} : memref<16x64xbf16, #tpu.memory_space<vmem>>, vector<16x64xbf16>,
    } else {
    }
    %c0 = arith.constant 0 : index
    %c0_4 = arith.constant 0 : index
    %8 = vector.load %arg16[%c0, %c0_4] : memref<16x64xbf16, #tpu.memory_space<vmem>>, vector<16x64xbf16>
    %c0_5 = arith.constant 0 : index
    %c0_6 = arith.constant 0 : index
    %c0_7 = arith.constant 0 : index
    %9 = vector.load %arg11[%c0_5, %c0_6, %c0_7] : memref<1x64x128xbf16, #tpu.memory_space<vmem>>, vector<1x64x128xbf16>
    %10 = vector.shape_cast %9 : vector<1x64x128xbf16> to vector<64x128xbf16>
    %cst = arith.constant dense<0.000000e+00> : vector<16x128xf32>
    %11 = tpu.matmul %8, %10, %cst {dimension_numbers = #tpu.dot_dimension_numbers<[1], [0], [0], [1], [0, 0, 1, 1], [], []>} : vector<16x64xbf16>, vector<64x128xbf16>, vector<16x128xf32> -> vector<16x128xf32>
    %c0_8 = arith.constant 0 : index
    %c0_9 = arith.constant 0 : index
    %c0_10 = arith.constant 0 : index
    %12 = vector.load %arg12[%c0_8, %c0_9, %c0_10] : memref<1x64x128xbf16, #tpu.memory_space<vmem>>, vector<1x64x128xbf16>
    %13 = vector.shape_cast %12 : vector<1x64x128xbf16> to vector<64x128xbf16>
    %cst_11 = arith.constant dense<0.000000e+00> : vector<16x128xf32>
    %14 = tpu.matmul %8, %13, %cst_11 {dimension_numbers = #tpu.dot_dimension_numbers<[1], [0], [0], [1], [0, 0, 1, 1], [], []>} : vector<16x64xbf16>, vector<64x128xbf16>, vector<16x128xf32> -> vector<16x128xf32>
    %15 = arith.negf %11 : vector<16x128xf32>
    %16 = math.exp %15 : vector<16x128xf32>
    %cst_12 = arith.constant 1.000000e+00 : f32
    %17 = vector.broadcast %cst_12 : f32 to vector<16x128xf32>
    %18 = arith.addf %17, %16 : vector<16x128xf32>
    %19 = arith.divf %17, %18 : vector<16x128xf32>
    %20 = arith.mulf %11, %19 : vector<16x128xf32>
    %21 = arith.mulf %20, %14 : vector<16x128xf32>
    %22 = arith.truncf %21 : vector<16x128xf32> to vector<16x128xbf16>
    %c0_13 = arith.constant 0 : index
    %c0_14 = arith.constant 0 : index
    %23 = vector.load %arg14[%c0_13, %c0_14] : memref<16x64xf32, #tpu.memory_space<vmem>>, vector<16x64xf32>
    %c0_15 = arith.constant 0 : index
    %c0_16 = arith.constant 0 : index
    %c0_17 = arith.constant 0 : index
    %24 = vector.load %arg13[%c0_15, %c0_16, %c0_17] : memref<1x128x64xbf16, #tpu.memory_space<vmem>>, vector<1x128x64xbf16>
    %25 = vector.shape_cast %24 : vector<1x128x64xbf16> to vector<128x64xbf16>
    %cst_18 = arith.constant dense<0.000000e+00> : vector<16x64xf32>
    %26 = tpu.matmul %22, %25, %cst_18 {dimension_numbers = #tpu.dot_dimension_numbers<[1], [0], [0], [1], [0, 0, 1, 1], [], []>} : vector<16x128xbf16>, vector<128x64xbf16>, vector<16x64xf32> -> vector<16x64xf32>
    %27 = arith.addf %23, %26 : vector<16x64xf32>
    %c0_19 = arith.constant 0 : index
    %c0_20 = arith.constant 0 : index
    %28 = vector.load %arg14[%c0_19, %c0_20] : memref<16x64xf32, #tpu.memory_space<vmem>>, vector<16x64xf32>
    tpu.vector_store %arg14[%c0_19, %c0_20], %27 {strides = array<i32>} : memref<16x64xf32, #tpu.memory_space<vmem>>, vector<16x64xf32>,
    return
  }
  func.func @transform_0(%arg0: i32, %arg1: i32) -> (i32, i32) {
    %c0_i32 = arith.constant 0 : i32
    %c0_i32_0 = arith.constant 0 : i32
    %c0_i32_1 = arith.constant 0 : i32
    return %c0_i32, %c0_i32_0 : i32, i32
  }
  func.func @transform_1(%arg0: i32, %arg1: i32) -> (i32, i32) {
    %c0_i32 = arith.constant 0 : i32
    %c0_i32_0 = arith.constant 0 : i32
    %c0_i32_1 = arith.constant 0 : i32
    return %c0_i32, %c0_i32_0 : i32, i32
  }
  func.func @transform_2(%arg0: i32, %arg1: i32) -> (i32, i32) {
    %c0_i32 = arith.constant 0 : i32
    %c0_i32_0 = arith.constant 0 : i32
    %c0_i32_1 = arith.constant 0 : i32
    return %c0_i32, %c0_i32_0 : i32, i32
  }
  func.func @transform_3(%arg0: i32, %arg1: i32) -> (i32, i32, i32) {
    %c0_i32 = arith.constant 0 : i32
    %c0_i32_0 = arith.constant 0 : i32
    %c0_i32_1 = arith.constant 0 : i32
    return %arg0, %c0_i32, %c0_i32_0 : i32, i32, i32
  }
  func.func @transform_4(%arg0: i32, %arg1: i32) -> (i32, i32, i32) {
    %c0_i32 = arith.constant 0 : i32
    %c0_i32_0 = arith.constant 0 : i32
    %c0_i32_1 = arith.constant 0 : i32
    return %arg0, %c0_i32, %c0_i32_0 : i32, i32, i32
  }
  func.func @transform_5(%arg0: i32, %arg1: i32) -> (i32, i32, i32) {
    %c0_i32 = arith.constant 0 : i32
    %c0_i32_0 = arith.constant 0 : i32
    %c0_i32_1 = arith.constant 0 : i32
    return %arg0, %c0_i32, %c0_i32_0 : i32, i32, i32
  }
  func.func @transform_6(%arg0: i32, %arg1: i32) -> (i32, i32, i32) {
    %c0_i32 = arith.constant 0 : i32
    %c0_i32_0 = arith.constant 0 : i32
    %c0_i32_1 = arith.constant 0 : i32
    return %arg0, %c0_i32, %c0_i32_0 : i32, i32, i32
  }
  func.func @transform_7(%arg0: i32, %arg1: i32) -> (i32, i32, i32) {
    %c0_i32 = arith.constant 0 : i32
    %c0_i32_0 = arith.constant 0 : i32
    %c0_i32_1 = arith.constant 0 : i32
    return %arg0, %c0_i32, %c0_i32_0 : i32, i32, i32
  }
  func.func @transform_8(%arg0: i32, %arg1: i32) -> (i32, i32, i32) {
    %c0_i32 = arith.constant 0 : i32
    %c0_i32_0 = arith.constant 0 : i32
    %c0_i32_1 = arith.constant 0 : i32
    return %arg0, %c0_i32, %c0_i32_0 : i32, i32, i32
  }
  func.func @transform_9(%arg0: i32, %arg1: i32) -> (i32, i32, i32) {
    %c0_i32 = arith.constant 0 : i32
    %c0_i32_0 = arith.constant 0 : i32
    return %arg0, %c0_i32, %arg1 : i32, i32, i32
  }
  func.func @transform_10(%arg0: i32, %arg1: i32) -> (i32, i32, i32) {
    %c0_i32 = arith.constant 0 : i32
    %c0_i32_0 = arith.constant 0 : i32
    return %arg0, %c0_i32, %arg1 : i32, i32, i32
  }
  func.func @transform_11(%arg0: i32, %arg1: i32) -> (i32, i32, i32) {
    %c0_i32 = arith.constant 0 : i32
    %c0_i32_0 = arith.constant 0 : i32
    return %arg0, %arg1, %c0_i32 : i32, i32, i32
  }
  func.func @transform_12(%arg0: i32, %arg1: i32) -> (i32, i32) {
    %c0_i32 = arith.constant 0 : i32
    %c0_i32_0 = arith.constant 0 : i32
    %c0_i32_1 = arith.constant 0 : i32
    return %c0_i32, %c0_i32_0 : i32, i32
  }
}

</mosaic_0001>

<llo_original>
// kernel: _lambda_.5
$region0: #{_lambda_.5}
  #allocation0 [shape = 'u32[]', space=smem, size = 0x4, offset = 0x4, fixed_abs, tag = 'smem constant byte address 0x4 - core index']
  #allocation1 [shape = 'u32[72,128]{1,0:T(1,128)}', space=vmem, size = 0x9000, scoped, tag = 'internal scratch']
  %s0 = inlined_call_operand.vmem [shape: f32[16,64], index: 0, kind: input, shape index: {}]
  %s1 = inlined_call_operand.vmem [shape: f32[1,64], index: 1, kind: input, shape index: {}]
  %s2 = inlined_call_operand.vmem [shape: bf16[64,128], index: 2, kind: input, shape index: {}]
  %s3 = inlined_call_operand.vmem [shape: f32[1,128], index: 3, kind: input, shape index: {}]
  %s4 = inlined_call_operand.vmem [shape: bf16[16,128], index: 4, kind: output, shape index: {}]
  %s5 = sld [smem:[#allocation0]]
  $region26: #{_lambda_.5} parent=0
    _
  %s7 = ssub.s32 1, %s5
  %s8 = scalar_select 0, %s7, %s5
  // Predicated region
  $region2: #{_lambda_.5} parent=0 // pred_check
    _
  $region3: #{_lambda_.5} parent=0 // pred_check_branch
    %10 = sbr.rel (0) target = $region5
  $region4: #{_lambda_.5} parent=0 // pred_region
    _
  $region5: #{_lambda_.5} parent=0 // pred_fallthru
    _
  // Predicated region
  $region6: #{_lambda_.5} parent=0 // pred_check
    _
  $region7: #{_lambda_.5} parent=0 // pred_check_branch
    %12 = sbr.rel (0) target = $region9
  $region8: #{_lambda_.5} parent=0 // pred_region
    _
  $region9: #{_lambda_.5} parent=0 // pred_fallthru
    _
  // Predicated region
  $region10: #{_lambda_.5} parent=0 // pred_check
    _
  $region11: #{_lambda_.5} parent=0 // pred_check_branch
    %14 = sbr.rel (0) target = $region13
  $region12: #{_lambda_.5} parent=0 // pred_region
    _
  $region13: #{_lambda_.5} parent=0 // pred_fallthru
    _
  // Predicated region
  $region14: #{_lambda_.5} parent=0 // pred_check
    _
  $region15: #{_lambda_.5} parent=0 // pred_check_branch
    %16 = sbr.rel (0) target = $region17
  $region16: #{_lambda_.5} parent=0 // pred_region
    _
  $region17: #{_lambda_.5} parent=0 // pred_fallthru
    _
  %v18 = vld [vmem:[%s0] sm:$0xff]
  %v19 = vld [vmem:[%s0 + $0x8] sm:$0xff]
  %v20 = vmul.f32 %v18, %v18
  %v21 = vmul.f32 %v19, %v19
  %vm22 = vcmask 523264
  %v23 = vsel %vm22, %v20, 0.0
  %24 = vadd.xlane.f32.xlu0 %v23
  %v25 = vpop.xlane.xlu0 %24
  %v26 = vsel %vm22, %v21, 0.0
  %27 = vadd.xlane.f32.xlu0 %v26
  %v28 = vpop.xlane.xlu0 %27
  %v29 = vrcp.pop 64.0
  %v30 = vmul.f32 64.0, %v29
  %v31 = vsub.f32 1.0, %v30
  %v32 = vmul.f32 %v29, %v31
  %v33 = vadd.f32 %v29, %v32
  %vm34 = vweird.f32 %v29
  %v35 = vsel %vm34, %v29, %v33
  %v36 = vmul.f32 %v25, %v35
  %v37 = vmul.f32 %v28, %v35
  %v38 = vadd.f32 %v36, 1e-05
  %v39 = vadd.f32 %v37, 1e-05
  %v40 = vrsqrt.pop %v38
  %v41 = vmul.f32 %v40, %v38
  %v42 = vmul.f32 %v41, %v40
  %v43 = vmul.f32 0.5, %v42
  %v44 = vsub.f32 1.5, %v43
  %v45 = vmul.f32 %v40, %v44
  %vm46 = vweird.f32 %v38
  %vm47 = vweird.f32 %v40
  %vm48 = vmor %vm46, %vm47
  %v49 = vsel %vm48, %v40, %v45
  %v50 = vrsqrt.pop %v39
  %v51 = vmul.f32 %v50, %v39
  %v52 = vmul.f32 %v51, %v50
  %v53 = vmul.f32 0.5, %v52
  %v54 = vsub.f32 1.5, %v53
  %v55 = vmul.f32 %v50, %v54
  %vm56 = vweird.f32 %v39
  %vm57 = vweird.f32 %v50
  %vm58 = vmor %vm56, %vm57
  %v59 = vsel %vm58, %v50, %v55
  %v60 = vmul.f32 %v18, %v49
  %v61 = vmul.f32 %v19, %v59
  %v62 = vld [vmem:[%s1] sm:$0x1]
  %v64 = vperm.slane %v62, 0
  %v66 = vmul.f32 %v60, %v64
  %v67 = vmul.f32 %v61, %v64
  %v68 = vpack.c.bf16 %v67, %v66
  %v69 = vld [vmem:[%s2] sm:$0xf]
  %v70 = vld [vmem:[%s2 + $0x4] sm:$0xf]
  %v71 = vld [vmem:[%s2 + $0x8] sm:$0xf]
  %v72 = vld [vmem:[%s2 + $0xc] sm:$0xf]
  %v73 = vld [vmem:[%s2 + $0x10] sm:$0xf]
  %v74 = vld [vmem:[%s2 + $0x14] sm:$0xf]
  %v75 = vld [vmem:[%s2 + $0x18] sm:$0xf]
  %v76 = vld [vmem:[%s2 + $0x1c] sm:$0xf]
  %v77 = vld [vmem:[%s3] sm:$0x1]
  %v79 = vperm.slane %v77, 0
  %v89 = vunpack.c.l.b16 %v69
  %v90 = vunpack.c.l.b16 %v70
  %v91 = vunpack.c.l.b16 %v71
  %v92 = vunpack.c.l.b16 %v72
  %v93 = vunpack.c.l.b16 %v73
  %v94 = vunpack.c.l.b16 %v74
  %v95 = vunpack.c.l.b16 %v75
  %v96 = vunpack.c.l.b16 %v76
  %v97 = vpack.c.b16 %v90, %v89
  %v98 = vpack.c.b16 %v92, %v91
  %v99 = vpack.c.b16 %v94, %v93
  %v100 = vpack.c.b16 %v96, %v95
  %v106 = vsel %vm22, %v68, 0
  %108 = vmatpush.bf16.msra.mxu0 0
  %109 = vmatpush.bf16.msra.mxu0 0
  %110 = vmatpush.bf16.msra.mxu0 0
  %111 = vmatpush.bf16.msra.mxu0 0
  %112 = vmatpush.bf16.msra.mxu0 %v100
  %113 = vmatpush.bf16.msra.mxu0 %v99
  %114 = vmatpush.bf16.msra.mxu0 %v98
  %115 = vmatpush.bf16.msra.mxu0 %v97
  %116 = vmatmul.bf16.gmra.mxu0 %v106
  %v117 = vpop.f32.mrf.mxu0
  %v118 = vadd.f32 %v79, %v117
  %v119 = vpop.f32.mrf.mxu0
  %v120 = vadd.f32 %v79, %v119
  %121 = vdwg.mxu0
  %v122 = vpack.c.bf16 %v118, %v118
  %v123 = vpack.c.bf16 %v120, %v120
  %124 = vst [vmem:[%s4] sm:$0xf] %v122
  %125 = vst [vmem:[%s4 + $0x4] sm:$0xf] %v123
  // Predicated region
  $region18: #{_lambda_.5} parent=0 // pred_check
    _
  $region19: #{_lambda_.5} parent=0 // pred_check_branch
    %127 = sbr.rel (0) target = $region21
  $region20: #{_lambda_.5} parent=0 // pred_region
    _
  $region21: #{_lambda_.5} parent=0 // pred_fallthru
    _
  // Predicated region
  $region22: #{_lambda_.5} parent=0 // pred_check
    _
  $region23: #{_lambda_.5} parent=0 // pred_check_branch
    %129 = sbr.rel (0) target = $region25
  $region24: #{_lambda_.5} parent=0 // pred_region
    _
  $region25: #{_lambda_.5} parent=0 // pred_fallthru
    _

// kernel: _lambda_.3
$region0: #{_lambda_.3}
  #allocation0 [shape = 'u32[]', space=smem, size = 0x4, offset = 0x4, fixed_abs, tag = 'smem constant byte address 0x4 - core index']
  #allocation1 [shape = 'u32[72,128]{1,0:T(1,128)}', space=vmem, size = 0x9000, scoped, tag = 'internal scratch']
  %s0 = inlined_call_operand.vmem [shape: f32[2,32], index: 0, kind: input, shape index: {}]
  %s1 = inlined_call_operand.hbm [shape: bf16[32,512], index: 1, kind: input, shape index: {}]
  %s2 = inlined_call_operand.vmem [shape: f32[1,512], index: 2, kind: input, shape index: {}]
  %s3 = inlined_call_operand.vmem [shape: f32[2,512], index: 3, kind: output, shape index: {}]
  %s4 = sld [smem:[#allocation0]]
  $region26: #{_lambda_.3} parent=0
    _
  %s6 = ssub.s32 1, %s4
  %s7 = scalar_select 0, %s6, %s4
  $region1: #{_lambda_.3} parent=0
    #allocation2 [shape = 'u8[32768]{0}', space=vmem, size = 0x8000, scoped, tag = 'input window, operand 1, single buffered']
    #allocation3 [shape = 's32[1]{0}', space=sflag, size = 0x4, scoped, tag = 'scoped memory for _lambda_.3']
    %8 = vsyncpa [#allocation3], 0
    // Predicated region
    $region2: #{_lambda_.3} parent=1 // pred_check
      _
    $region3: #{_lambda_.3} parent=1 // pred_check_branch
      %10 = sbr.rel (0) target = $region5
    $region4: #{_lambda_.3} parent=1 // pred_region
      _
    $region5: #{_lambda_.3} parent=1 // pred_fallthru
      _
    // Predicated region
    $region6: #{_lambda_.3} parent=1 // pred_check
      _
    $region7: #{_lambda_.3} parent=1 // pred_check_branch
      %12 = sbr.rel (0) target = $region9
    $region8: #{_lambda_.3} parent=1 // pred_region
      %14 = vsyncadd [#allocation3], 0
      %s15 = sshll.u32 %s1, 4
      %s16 = int_to_ptr.hbm [resolvable:$true] %s15
      %s17 = sshll.u32 [#allocation2], 4
      %s18 = int_to_ptr.vmem [resolvable:$true] %s17
      %23 = dma.hbm_to_vmem [thread:$0]  %s16, 1024, %s18, [#allocation3], 256, 256, 16
    $region9: #{_lambda_.3} parent=1 // pred_fallthru
      _
    // Predicated region
    $region10: #{_lambda_.3} parent=1 // pred_check
      _
    $region11: #{_lambda_.3} parent=1 // pred_check_branch
      %25 = sbr.rel (0) target = $region13
    $region12: #{_lambda_.3} parent=1 // pred_region
      _
    $region13: #{_lambda_.3} parent=1 // pred_fallthru
      _
    // Predicated region
    $region14: #{_lambda_.3} parent=1 // pred_check
      _
    $region15: #{_lambda_.3} parent=1 // pred_check_branch
      %27 = sbr.rel (0) target = $region17
    $region16: #{_lambda_.3} parent=1 // pred_region
      %29 = dma.done [#allocation3], 1024
    $region17: #{_lambda_.3} parent=1 // pred_fallthru
      _
    %v31 = vld [vmem:[%s0] sm:$0x3]
    %v32 = vpack.c.bf16 %v31, %v31
    %v33 = vld [vmem:[#allocation2] sm:$0xff]
    %v34 = vld [vmem:[#allocation2 + $0x8] sm:$0xff]
    %v35 = vld [vmem:[#allocation2 + $0x10] sm:$0xff]
    %v36 = vld [vmem:[#allocation2 + $0x18] sm:$0xff]
    %v37 = vld [vmem:[#allocation2 + $0x20] sm:$0xff]
    %v38 = vld [vmem:[#allocation2 + $0x28] sm:$0xff]
    %v39 = vld [vmem:[#allocation2 + $0x30] sm:$0xff]
    %v40 = vld [vmem:[#allocation2 + $0x38] sm:$0xff]
    %v41 = vld [vmem:[%s2] sm:$0xf]
    %v43 = vperm.slane %v41, 0
    %v44 = vperm.slane %v41, 1
    %v45 = vperm.slane %v41, 2
    %v46 = vperm.slane %v41, 3
    %v59 = vunpack.c.l.b16 %v33
    %v60 = vunpack.c.h.b16 %v33
    %v61 = vunpack.c.l.b16 %v34
    %v62 = vunpack.c.h.b16 %v34
    %v63 = vunpack.c.l.b16 %v35
    %v64 = vunpack.c.h.b16 %v35
    %v65 = vunpack.c.l.b16 %v36
    %v66 = vunpack.c.h.b16 %v36
    %v67 = vunpack.c.l.b16 %v37
    %v68 = vunpack.c.h.b16 %v37
    %v69 = vunpack.c.l.b16 %v38
    %v70 = vunpack.c.h.b16 %v38
    %v71 = vunpack.c.l.b16 %v39
    %v72 = vunpack.c.h.b16 %v39
    %v73 = vunpack.c.l.b16 %v40
    %v74 = vunpack.c.h.b16 %v40
    %v75 = vpack.c.b16 %v63, %v59
    %v76 = vpack.c.b16 %v64, %v60
    %v77 = vpack.c.b16 %v65, %v61
    %v78 = vpack.c.b16 %v66, %v62
    %v79 = vpack.c.b16 %v71, %v67
    %v80 = vpack.c.b16 %v72, %v68
    %v81 = vpack.c.b16 %v73, %v69
    %v82 = vpack.c.b16 %v74, %v70
    %vm91 = vcmask 261120
    %v93 = vsel %vm91, %v32, 0
    %95 = vmatpush.bf16.msra.mxu0 0
    %96 = vmatpush.bf16.msra.mxu0 0
    %97 = vmatpush.bf16.msra.mxu0 0
    %98 = vmatpush.bf16.msra.mxu0 0
    %99 = vmatpush.bf16.msra.mxu0 0
    %100 = vmatpush.bf16.msra.mxu0 0
    %101 = vmatpush.bf16.msra.mxu0 %v79
    %102 = vmatpush.bf16.msra.mxu0 %v75
    %103 = vmatmul.bf16.gmra.mxu0 %v93
    %v104 = vpop.f32.mrf.mxu0
    %v105 = vadd.f32 %v43, %v104
    %v106 = vpop.f32.mrf.mxu0
    %107 = vdwg.mxu0
    %108 = vmatpush.bf16.msra.mxu0 0
    %109 = vmatpush.bf16.msra.mxu0 0
    %110 = vmatpush.bf16.msra.mxu0 0
    %111 = vmatpush.bf16.msra.mxu0 0
    %112 = vmatpush.bf16.msra.mxu0 0
    %113 = vmatpush.bf16.msra.mxu0 0
    %114 = vmatpush.bf16.msra.mxu0 %v80
    %115 = vmatpush.bf16.msra.mxu0 %v76
    %116 = vmatmul.bf16.gmra.mxu0 %v93
    %v117 = vpop.f32.mrf.mxu0
    %v118 = vadd.f32 %v44, %v117
    %v119 = vpop.f32.mrf.mxu0
    %120 = vdwg.mxu0
    %121 = vmatpush.bf16.msra.mxu0 0
    %122 = vmatpush.bf16.msra.mxu0 0
    %123 = vmatpush.bf16.msra.mxu0 0
    %124 = vmatpush.bf16.msra.mxu0 0
    %125 = vmatpush.bf16.msra.mxu0 0
    %126 = vmatpush.bf16.msra.mxu0 0
    %127 = vmatpush.bf16.msra.mxu0 %v81
    %128 = vmatpush.bf16.msra.mxu0 %v77
    %129 = vmatmul.bf16.gmra.mxu0 %v93
    %v130 = vpop.f32.mrf.mxu0
    %v131 = vadd.f32 %v45, %v130
    %v132 = vpop.f32.mrf.mxu0
    %133 = vdwg.mxu0
    %134 = vmatpush.bf16.msra.mxu0 0
    %135 = vmatpush.bf16.msra.mxu0 0
    %136 = vmatpush.bf16.msra.mxu0 0
    %137 = vmatpush.bf16.msra.mxu0 0
    %138 = vmatpush.bf16.msra.mxu0 0
    %139 = vmatpush.bf16.msra.mxu0 0
    %140 = vmatpush.bf16.msra.mxu0 %v82
    %141 = vmatpush.bf16.msra.mxu0 %v78
    %142 = vmatmul.bf16.gmra.mxu0 %v93
    %v143 = vpop.f32.mrf.mxu0
    %v144 = vadd.f32 %v46, %v143
    %v145 = vpop.f32.mrf.mxu0
    %146 = vdwg.mxu0
    %v151 = vrot.slane %v118, 6
    %v152 = vrot.slane %v131, 4
    %v153 = vrot.slane %v144, 2
    %vm154 = vcmask 1041408
    %v155 = vsel %vm154, %v105, %v151
    %vm156 = vcmask 1045508
    %v157 = vsel %vm156, %v152, %v153
    %vm158 = vcmask 1043456
    %v159 = vsel %vm158, %v155, %v157
    %161 = vst [vmem:[%s3] sm:$0xff] %v159
    // Predicated region
    $region18: #{_lambda_.3} parent=1 // pred_check
      _
    $region19: #{_lambda_.3} parent=1 // pred_check_branch
      %163 = sbr.rel (0) target = $region21
    $region20: #{_lambda_.3} parent=1 // pred_region
      _
    $region21: #{_lambda_.3} parent=1 // pred_fallthru
      _
    // Predicated region
    $region22: #{_lambda_.3} parent=1 // pred_check
      _
    $region23: #{_lambda_.3} parent=1 // pred_check_branch
      %165 = sbr.rel (0) target = $region25
    $region24: #{_lambda_.3} parent=1 // pred_region
      _
    $region25: #{_lambda_.3} parent=1 // pred_fallthru
      _
    %166 = vsyncpa [#allocation3], 1

// kernel: _lambda_.4
$region0: #{_lambda_.4}
  #allocation0 [shape = 'u32[]', space=smem, size = 0x4, offset = 0x4, fixed_abs, tag = 'smem constant byte address 0x4 - core index']
  #allocation1 [shape = 'u32[72,128]{1,0:T(1,128)}', space=vmem, size = 0x9000, scoped, tag = 'internal scratch']
  #allocation2 [shape = 'bf16[16,64]{1,0:T(8,128)(2,1)}', space=vmem, size = 0x1000, scoped, tag = 'scratch operand']
  #allocation3 [shape = 'bf16[16,64]{1,0:T(8,128)(2,1)}', space=vmem, size = 0x1000, scoped, tag = 'scratch operand']
  %s0 = inlined_call_operand.vmem [shape: f32[16,64], index: 0, kind: input, shape index: {}, may-alias: {0,12}]
  %s1 = inlined_call_operand.vmem [shape: f32[8,16], index: 1, kind: input, shape index: {}]
  %s2 = inlined_call_operand.vmem [shape: f32[8,16], index: 2, kind: input, shape index: {}]
  %s3 = inlined_call_operand.vmem [shape: f32[2,1,64], index: 3, kind: input, shape index: {}]
  %s4 = inlined_call_operand.vmem [shape: f32[2,1,64], index: 4, kind: input, shape index: {}]
  %s5 = inlined_call_operand.vmem [shape: bf16[2,64,64], index: 5, kind: input, shape index: {}]
  %s6 = inlined_call_operand.vmem [shape: bf16[2,64,32], index: 6, kind: input, shape index: {}]
  %s7 = inlined_call_operand.vmem [shape: bf16[2,64,32], index: 7, kind: input, shape index: {}]
  %s8 = inlined_call_operand.vmem [shape: bf16[2,64,64], index: 8, kind: input, shape index: {}]
  %s9 = inlined_call_operand.vmem [shape: bf16[2,64,128], index: 9, kind: input, shape index: {}]
  %s10 = inlined_call_operand.vmem [shape: bf16[2,64,128], index: 10, kind: input, shape index: {}]
  %s11 = inlined_call_operand.vmem [shape: bf16[2,128,64], index: 11, kind: input, shape index: {}]
  %s12 = inlined_call_operand.vmem [shape: f32[16,64], index: 12, kind: output, shape index: {}, may-alias: {0,12}]
  %s13 = sld [smem:[#allocation0]]
  $region89: #{_lambda_.4} parent=0
    _
  %s15 = ssub.s32 1, %s13
  %s16 = scalar_select 0, %s15, %s13
  loop: start=0, step=1, limit=4
  $region2: #{_lambda_.4} parent=0 // loop_pre_header
    _
  $region3: #{_lambda_.4} parent=0 // loop_header
    %s18 = sphi 0, %s22
    %p19 = scmp.ge.s32.totalorder %s18, 4
    %s25 = sphi 0, %s37
    %s26 = sphi 0, %s33
    %s27 = sphi 0, %s25
    %s28 = sphi 0, %s26
    %s29 = sphi 0, %s27
    %s30 = sphi 0, %s28
    %s38 = sphi 0, %s38
    %s40 = sphi 0, %s38
    %s41 = sphi 0, %s40
    %s55 = sphi 0, %s41
    %s59 = sphi 0, %s59
    %s61 = sphi 0, %s59
    %s62 = sphi 0, %s61
    %s76 = sphi 0, %s62
    %s80 = sphi 0, %s80
    %s82 = sphi 0, %s80
    %s83 = sphi 0, %s82
    %s97 = sphi 0, %s83
    %s103 = sphi 0, %s105
    %s106 = sphi 0, %s103
    %s107 = sphi 0, %s106
    %s123 = sphi 0, %s107
    %s129 = sphi 0, %s131
    %s132 = sphi 0, %s129
    %s133 = sphi 0, %s132
    %s149 = sphi 0, %s133
    %s155 = sphi 0, %s157
    %s158 = sphi 0, %s155
    %s159 = sphi 0, %s158
    %s175 = sphi 0, %s159
    %s181 = sphi 0, %s183
    %s184 = sphi 0, %s181
    %s185 = sphi 0, %s184
    %s201 = sphi 0, %s185
    %s207 = sphi 0, %s209
    %s210 = sphi 0, %s207
    %s211 = sphi 0, %s210
    %s227 = sphi 0, %s211
    %s233 = sphi 0, %s235
    %s236 = sphi 0, %s233
    %s237 = sphi 0, %s236
    %s253 = sphi 0, %s237
    %s261 = sphi 0, %s263
    %s264 = sphi 0, %s261
    %s265 = sphi 0, %s264
    %s281 = sphi 0, %s265
    %s289 = sphi 0, %s291
    %s292 = sphi 0, %s289
    %s293 = sphi 0, %s292
    %s309 = sphi 0, %s293
    %s317 = sphi 0, %s319
    %s320 = sphi 0, %s317
    %s321 = sphi 0, %s320
    %s337 = sphi 0, %s321
    %s341 = sphi 0, %s341
    %s343 = sphi 0, %s341
    %s344 = sphi 0, %s343
    %s358 = sphi 0, %s344
  $region4: #{_lambda_.4} parent=0 // loop_header_branch
    %21 = sbr.rel (%p19) target = $region8
  $region5: #{_lambda_.4} parent=0 // loop_body
    %s23 = ssub.s32 %s18, 1
    %s24 = ssub.s32 %s18, 2
    %s31 = sadd.s32 1, %s26
    %p32 = scmp.ge.s32.totalorder %s31, 1
    %s33 = scalar_select %p32, 0, %s31
    %s34 = sadd.s32 1, %s25
    %s35 = scalar_select %p32, %s34, %s25
    %p36 = scmp.ge.s32.totalorder %s35, 2
    %s37 = scalar_select %p36, 0, %s35
    %s39 = sadd.s32 %s38, 1
    %p42 = scmp.eq.s32.totalorder %s18, 1
    %p43 = scmp.ne.s32.totalorder %s38, %s40
    %p44 = scmp.eq.s32.totalorder %s18, 0
    %p45 = por %p43, %p44
    %p46 = scmp.ne.s32.totalorder %s38, %s40
    %p47 = scmp.eq.s32.totalorder %s23, 1
    %p48 = por %p46, %p47
    %p49 = scmp.ne.s32.totalorder %s40, %s41
    %p50 = scmp.eq.s32.totalorder %s23, 0
    %p51 = por %p49, %p50
    %p52 = scmp.ne.s32.totalorder %s40, %s41
    %p53 = scmp.eq.s32.totalorder %s24, 1
    %p54 = por %p52, %p53
    %p56 = scmp.ne.s32.totalorder %s41, %s55
    %p57 = scmp.eq.s32.totalorder %s24, 0
    %p58 = por %p56, %p57
    %s60 = sadd.s32 %s59, 1
    %p63 = scmp.eq.s32.totalorder %s18, 1
    %p64 = scmp.ne.s32.totalorder %s59, %s61
    %p65 = scmp.eq.s32.totalorder %s18, 0
    %p66 = por %p64, %p65
    %p67 = scmp.ne.s32.totalorder %s59, %s61
    %p68 = scmp.eq.s32.totalorder %s23, 1
    %p69 = por %p67, %p68
    %p70 = scmp.ne.s32.totalorder %s61, %s62
    %p71 = scmp.eq.s32.totalorder %s23, 0
    %p72 = por %p70, %p71
    %p73 = scmp.ne.s32.totalorder %s61, %s62
    %p74 = scmp.eq.s32.totalorder %s24, 1
    %p75 = por %p73, %p74
    %p77 = scmp.ne.s32.totalorder %s62, %s76
    %p78 = scmp.eq.s32.totalorder %s24, 0
    %p79 = por %p77, %p78
    %s81 = sadd.s32 %s80, 1
    %p84 = scmp.eq.s32.totalorder %s18, 1
    %p85 = scmp.ne.s32.totalorder %s80, %s82
    %p86 = scmp.eq.s32.totalorder %s18, 0
    %p87 = por %p85, %p86
    %p88 = scmp.ne.s32.totalorder %s80, %s82
    %p89 = scmp.eq.s32.totalorder %s23, 1
    %p90 = por %p88, %p89
    %p91 = scmp.ne.s32.totalorder %s82, %s83
    %p92 = scmp.eq.s32.totalorder %s23, 0
    %p93 = por %p91, %p92
    %p94 = scmp.ne.s32.totalorder %s82, %s83
    %p95 = scmp.eq.s32.totalorder %s24, 1
    %p96 = por %p94, %p95
    %p98 = scmp.ne.s32.totalorder %s83, %s97
    %p99 = scmp.eq.s32.totalorder %s24, 0
    %p100 = por %p98, %p99
    %s101 = ssub.s32 %s25, %s37
    %p102 = scmp.eq.s32.totalorder %s101, 0
    %s104 = sadd.s32 %s103, 1
    %s105 = scalar_select %p102, %s103, %s104
    %p108 = pneg %p102
    %p109 = scmp.eq.s32.totalorder %s18, 1
    %p110 = por %p108, %p109
    %p111 = scmp.ne.s32.totalorder %s103, %s106
    %p112 = scmp.eq.s32.totalorder %s18, 0
    %p113 = por %p111, %p112
    %p114 = scmp.ne.s32.totalorder %s103, %s106
    %p115 = scmp.eq.s32.totalorder %s23, 1
    %p116 = por %p114, %p115
    %p117 = scmp.ne.s32.totalorder %s106, %s107
    %p118 = scmp.eq.s32.totalorder %s23, 0
    %p119 = por %p117, %p118
    %p120 = scmp.ne.s32.totalorder %s106, %s107
    %p121 = scmp.eq.s32.totalorder %s24, 1
    %p122 = por %p120, %p121
    %p124 = scmp.ne.s32.totalorder %s107, %s123
    %p125 = scmp.eq.s32.totalorder %s24, 0
    %p126 = por %p124, %p125
    %s127 = ssub.s32 %s25, %s37
    %p128 = scmp.eq.s32.totalorder %s127, 0
    %s130 = sadd.s32 %s129, 1
    %s131 = scalar_select %p128, %s129, %s130
    %p134 = pneg %p128
    %p135 = scmp.eq.s32.totalorder %s18, 1
    %p136 = por %p134, %p135
    %p137 = scmp.ne.s32.totalorder %s129, %s132
    %p138 = scmp.eq.s32.totalorder %s18, 0
    %p139 = por %p137, %p138
    %p140 = scmp.ne.s32.totalorder %s129, %s132
    %p141 = scmp.eq.s32.totalorder %s23, 1
    %p142 = por %p140, %p141
    %p143 = scmp.ne.s32.totalorder %s132, %s133
    %p144 = scmp.eq.s32.totalorder %s23, 0
    %p145 = por %p143, %p144
    %p146 = scmp.ne.s32.totalorder %s132, %s133
    %p147 = scmp.eq.s32.totalorder %s24, 1
    %p148 = por %p146, %p147
    %p150 = scmp.ne.s32.totalorder %s133, %s149
    %p151 = scmp.eq.s32.totalorder %s24, 0
    %p152 = por %p150, %p151
    %s153 = ssub.s32 %s25, %s37
    %p154 = scmp.eq.s32.totalorder %s153, 0
    %s156 = sadd.s32 %s155, 1
    %s157 = scalar_select %p154, %s155, %s156
    %p160 = pneg %p154
    %p161 = scmp.eq.s32.totalorder %s18, 1
    %p162 = por %p160, %p161
    %p163 = scmp.ne.s32.totalorder %s155, %s158
    %p164 = scmp.eq.s32.totalorder %s18, 0
    %p165 = por %p163, %p164
    %p166 = scmp.ne.s32.totalorder %s155, %s158
    %p167 = scmp.eq.s32.totalorder %s23, 1
    %p168 = por %p166, %p167
    %p169 = scmp.ne.s32.totalorder %s158, %s159
    %p170 = scmp.eq.s32.totalorder %s23, 0
    %p171 = por %p169, %p170
    %p172 = scmp.ne.s32.totalorder %s158, %s159
    %p173 = scmp.eq.s32.totalorder %s24, 1
    %p174 = por %p172, %p173
    %p176 = scmp.ne.s32.totalorder %s159, %s175
    %p177 = scmp.eq.s32.totalorder %s24, 0
    %p178 = por %p176, %p177
    %s179 = ssub.s32 %s25, %s37
    %p180 = scmp.eq.s32.totalorder %s179, 0
    %s182 = sadd.s32 %s181, 1
    %s183 = scalar_select %p180, %s181, %s182
    %p186 = pneg %p180
    %p187 = scmp.eq.s32.totalorder %s18, 1
    %p188 = por %p186, %p187
    %p189 = scmp.ne.s32.totalorder %s181, %s184
    %p190 = scmp.eq.s32.totalorder %s18, 0
    %p191 = por %p189, %p190
    %p192 = scmp.ne.s32.totalorder %s181, %s184
    %p193 = scmp.eq.s32.totalorder %s23, 1
    %p194 = por %p192, %p193
    %p195 = scmp.ne.s32.totalorder %s184, %s185
    %p196 = scmp.eq.s32.totalorder %s23, 0
    %p197 = por %p195, %p196
    %p198 = scmp.ne.s32.totalorder %s184, %s185
    %p199 = scmp.eq.s32.totalorder %s24, 1
    %p200 = por %p198, %p199
    %p202 = scmp.ne.s32.totalorder %s185, %s201
    %p203 = scmp.eq.s32.totalorder %s24, 0
    %p204 = por %p202, %p203
    %s205 = ssub.s32 %s25, %s37
    %p206 = scmp.eq.s32.totalorder %s205, 0
    %s208 = sadd.s32 %s207, 1
    %s209 = scalar_select %p206, %s207, %s208
    %p212 = pneg %p206
    %p213 = scmp.eq.s32.totalorder %s18, 1
    %p214 = por %p212, %p213
    %p215 = scmp.ne.s32.totalorder %s207, %s210
    %p216 = scmp.eq.s32.totalorder %s18, 0
    %p217 = por %p215, %p216
    %p218 = scmp.ne.s32.totalorder %s207, %s210
    %p219 = scmp.eq.s32.totalorder %s23, 1
    %p220 = por %p218, %p219
    %p221 = scmp.ne.s32.totalorder %s210, %s211
    %p222 = scmp.eq.s32.totalorder %s23, 0
    %p223 = por %p221, %p222
    %p224 = scmp.ne.s32.totalorder %s210, %s211
    %p225 = scmp.eq.s32.totalorder %s24, 1
    %p226 = por %p224, %p225
    %p228 = scmp.ne.s32.totalorder %s211, %s227
    %p229 = scmp.eq.s32.totalorder %s24, 0
    %p230 = por %p228, %p229
    %s231 = ssub.s32 %s25, %s37
    %p232 = scmp.eq.s32.totalorder %s231, 0
    %s234 = sadd.s32 %s233, 1
    %s235 = scalar_select %p232, %s233, %s234
    %p238 = pneg %p232
    %p239 = scmp.eq.s32.totalorder %s18, 1
    %p240 = por %p238, %p239
    %p241 = scmp.ne.s32.totalorder %s233, %s236
    %p242 = scmp.eq.s32.totalorder %s18, 0
    %p243 = por %p241, %p242
    %p244 = scmp.ne.s32.totalorder %s233, %s236
    %p245 = scmp.eq.s32.totalorder %s23, 1
    %p246 = por %p244, %p245
    %p247 = scmp.ne.s32.totalorder %s236, %s237
    %p248 = scmp.eq.s32.totalorder %s23, 0
    %p249 = por %p247, %p248
    %p250 = scmp.ne.s32.totalorder %s236, %s237
    %p251 = scmp.eq.s32.totalorder %s24, 1
    %p252 = por %p250, %p251
    %p254 = scmp.ne.s32.totalorder %s237, %s253
    %p255 = scmp.eq.s32.totalorder %s24, 0
    %p256 = por %p254, %p255
    %s257 = ssub.s32 %s25, %s37
    %s258 = ssub.s32 %s26, %s33
    %s259 = sor.u32 %s257, %s258
    %p260 = scmp.eq.s32.totalorder %s259, 0
    %s262 = sadd.s32 %s261, 1
    %s263 = scalar_select %p260, %s261, %s262
    %p266 = pneg %p260
    %p267 = scmp.eq.s32.totalorder %s18, 1
    %p268 = por %p266, %p267
    %p269 = scmp.ne.s32.totalorder %s261, %s264
    %p270 = scmp.eq.s32.totalorder %s18, 0
    %p271 = por %p269, %p270
    %p272 = scmp.ne.s32.totalorder %s261, %s264
    %p273 = scmp.eq.s32.totalorder %s23, 1
    %p274 = por %p272, %p273
    %p275 = scmp.ne.s32.totalorder %s264, %s265
    %p276 = scmp.eq.s32.totalorder %s23, 0
    %p277 = por %p275, %p276
    %p278 = scmp.ne.s32.totalorder %s264, %s265
    %p279 = scmp.eq.s32.totalorder %s24, 1
    %p280 = por %p278, %p279
    %p282 = scmp.ne.s32.totalorder %s265, %s281
    %p283 = scmp.eq.s32.totalorder %s24, 0
    %p284 = por %p282, %p283
    %s285 = ssub.s32 %s25, %s37
    %s286 = ssub.s32 %s26, %s33
    %s287 = sor.u32 %s285, %s286
    %p288 = scmp.eq.s32.totalorder %s287, 0
    %s290 = sadd.s32 %s289, 1
    %s291 = scalar_select %p288, %s289, %s290
    %p294 = pneg %p288
    %p295 = scmp.eq.s32.totalorder %s18, 1
    %p296 = por %p294, %p295
    %p297 = scmp.ne.s32.totalorder %s289, %s292
    %p298 = scmp.eq.s32.totalorder %s18, 0
    %p299 = por %p297, %p298
    %p300 = scmp.ne.s32.totalorder %s289, %s292
    %p301 = scmp.eq.s32.totalorder %s23, 1
    %p302 = por %p300, %p301
    %p303 = scmp.ne.s32.totalorder %s292, %s293
    %p304 = scmp.eq.s32.totalorder %s23, 0
    %p305 = por %p303, %p304
    %p306 = scmp.ne.s32.totalorder %s292, %s293
    %p307 = scmp.eq.s32.totalorder %s24, 1
    %p308 = por %p306, %p307
    %p310 = scmp.ne.s32.totalorder %s293, %s309
    %p311 = scmp.eq.s32.totalorder %s24, 0
    %p312 = por %p310, %p311
    %s313 = ssub.s32 %s25, %s37
    %s314 = ssub.s32 %s26, %s33
    %s315 = sor.u32 %s313, %s314
    %p316 = scmp.eq.s32.totalorder %s315, 0
    %s318 = sadd.s32 %s317, 1
    %s319 = scalar_select %p316, %s317, %s318
    %p322 = pneg %p316
    %p323 = scmp.eq.s32.totalorder %s18, 1
    %p324 = por %p322, %p323
    %p325 = scmp.ne.s32.totalorder %s317, %s320
    %p326 = scmp.eq.s32.totalorder %s18, 0
    %p327 = por %p325, %p326
    %p328 = scmp.ne.s32.totalorder %s317, %s320
    %p329 = scmp.eq.s32.totalorder %s23, 1
    %p330 = por %p328, %p329
    %p331 = scmp.ne.s32.totalorder %s320, %s321
    %p332 = scmp.eq.s32.totalorder %s23, 0
    %p333 = por %p331, %p332
    %p334 = scmp.ne.s32.totalorder %s320, %s321
    %p335 = scmp.eq.s32.totalorder %s24, 1
    %p336 = por %p334, %p335
    %p338 = scmp.ne.s32.totalorder %s321, %s337
    %p339 = scmp.eq.s32.totalorder %s24, 0
    %p340 = por %p338, %p339
    %s342 = sadd.s32 %s341, 1
    %p345 = scmp.eq.s32.totalorder %s18, 1
    %p346 = scmp.ne.s32.totalorder %s341, %s343
    %p347 = scmp.eq.s32.totalorder %s18, 0
    %p348 = por %p346, %p347
    %p349 = scmp.ne.s32.totalorder %s341, %s343
    %p350 = scmp.eq.s32.totalorder %s23, 1
    %p351 = por %p349, %p350
    %p352 = scmp.ne.s32.totalorder %s343, %s344
    %p353 = scmp.eq.s32.totalorder %s23, 0
    %p354 = por %p352, %p353
    %p355 = scmp.ne.s32.totalorder %s343, %s344
    %p356 = scmp.eq.s32.totalorder %s24, 1
    %p357 = por %p355, %p356
    %p359 = scmp.ne.s32.totalorder %s344, %s358
    %p360 = scmp.eq.s32.totalorder %s24, 0
    %p361 = por %p359, %p360
    %p362 = scmp.le.s32.totalorder 1, %s18
    %p363 = scmp.lt.s32.totalorder %s18, 3
    %p364 = pnand %p362, %p363
    %p365 = pneg %p364
    // Predicated region
    $region9: #{_lambda_.4} parent=5 // pred_check
      _
    $region10: #{_lambda_.4} parent=5 // pred_check_branch
      %367 = sbr.rel (%p364) target = $region12
    $region11: #{_lambda_.4} parent=5 // pred_region
      %s368 = ssub.s32 %s18, 1
      // Predicated region
      $region13: #{_lambda_.4} parent=11 // pred_check
        %p369 = pneg %p51
      $region14: #{_lambda_.4} parent=11 // pred_check_branch
        %371 = sbr.rel (%p369) target = $region16
      $region15: #{_lambda_.4} parent=11 // pred_region
        _
      $region16: #{_lambda_.4} parent=11 // pred_fallthru
        _
      // Predicated region
      $region17: #{_lambda_.4} parent=11 // pred_check
        %p372 = pneg %p72
      $region18: #{_lambda_.4} parent=11 // pred_check_branch
        %374 = sbr.rel (%p372) target = $region20
      $region19: #{_lambda_.4} parent=11 // pred_region
        _
      $region20: #{_lambda_.4} parent=11 // pred_fallthru
        _
      // Predicated region
      $region21: #{_lambda_.4} parent=11 // pred_check
        %p375 = pneg %p93
      $region22: #{_lambda_.4} parent=11 // pred_check_branch
        %377 = sbr.rel (%p375) target = $region24
      $region23: #{_lambda_.4} parent=11 // pred_region
        _
      $region24: #{_lambda_.4} parent=11 // pred_fallthru
        _
    $region12: #{_lambda_.4} parent=5 // pred_fallthru
      _
    %p378 = scmp.lt.s32.totalorder %s18, 2
    // Predicated region
    $region25: #{_lambda_.4} parent=5 // pred_check
      %p379 = pneg %p378
    $region26: #{_lambda_.4} parent=5 // pred_check_branch
      %381 = sbr.rel (%p379) target = $region28
    $region27: #{_lambda_.4} parent=5 // pred_region
      // Predicated region
      $region29: #{_lambda_.4} parent=27 // pred_check
        %p382 = pneg %p113
      $region30: #{_lambda_.4} parent=27 // pred_check_branch
        %384 = sbr.rel (%p382) target = $region32
      $region31: #{_lambda_.4} parent=27 // pred_region
        %p385 = scmp.lt.s32.totalorder %s25, 1
        %s386 = scalar_select %p385, %s25, 1
        %s387 = scalar_lea.vmem %s3, %s386
      $region32: #{_lambda_.4} parent=27 // pred_fallthru
        _
      // Predicated region
      $region33: #{_lambda_.4} parent=27 // pred_check
        %p388 = pneg %p139
      $region34: #{_lambda_.4} parent=27 // pred_check_branch
        %390 = sbr.rel (%p388) target = $region36
      $region35: #{_lambda_.4} parent=27 // pred_region
        %p391 = scmp.lt.s32.totalorder %s25, 1
        %s392 = scalar_select %p391, %s25, 1
        %s393 = scalar_lea.vmem %s4, %s392
      $region36: #{_lambda_.4} parent=27 // pred_fallthru
        _
      // Predicated region
      $region37: #{_lambda_.4} parent=27 // pred_check
        %p394 = pneg %p165
      $region38: #{_lambda_.4} parent=27 // pred_check_branch
        %396 = sbr.rel (%p394) target = $region40
      $region39: #{_lambda_.4} parent=27 // pred_region
        %p397 = scmp.lt.s32.totalorder %s25, 1
        %s398 = scalar_select %p397, %s25, 1
        %s399 = smul.addr %s398, 8
        %s400 = smul.addr %s399, 4
        %s401 = scalar_lea.vmem %s5, %s400
      $region40: #{_lambda_.4} parent=27 // pred_fallthru
        _
      // Predicated region
      $region41: #{_lambda_.4} parent=27 // pred_check
        %p402 = pneg %p191
      $region42: #{_lambda_.4} parent=27 // pred_check_branch
        %404 = sbr.rel (%p402) target = $region44
      $region43: #{_lambda_.4} parent=27 // pred_region
        %p405 = scmp.lt.s32.totalorder %s25, 1
        %s406 = scalar_select %p405, %s25, 1
        %s407 = smul.addr %s406, 8
        %s408 = smul.addr %s407, 4
        %s409 = scalar_lea.vmem %s6, %s408
      $region44: #{_lambda_.4} parent=27 // pred_fallthru
        _
      // Predicated region
      $region45: #{_lambda_.4} parent=27 // pred_check
        %p410 = pneg %p217
      $region46: #{_lambda_.4} parent=27 // pred_check_branch
        %412 = sbr.rel (%p410) target = $region48
      $region47: #{_lambda_.4} parent=27 // pred_region
        %p413 = scmp.lt.s32.totalorder %s25, 1
        %s414 = scalar_select %p413, %s25, 1
        %s415 = smul.addr %s414, 8
        %s416 = smul.addr %s415, 4
        %s417 = scalar_lea.vmem %s7, %s416
      $region48: #{_lambda_.4} parent=27 // pred_fallthru
        _
      // Predicated region
      $region49: #{_lambda_.4} parent=27 // pred_check
        %p418 = pneg %p243
      $region50: #{_lambda_.4} parent=27 // pred_check_branch
        %420 = sbr.rel (%p418) target = $region52
      $region51: #{_lambda_.4} parent=27 // pred_region
        %p421 = scmp.lt.s32.totalorder %s25, 1
        %s422 = scalar_select %p421, %s25, 1
        %s423 = smul.addr %s422, 8
        %s424 = smul.addr %s423, 4
        %s425 = scalar_lea.vmem %s8, %s424
      $region52: #{_lambda_.4} parent=27 // pred_fallthru
        _
      // Predicated region
      $region53: #{_lambda_.4} parent=27 // pred_check
        %p426 = pneg %p271
      $region54: #{_lambda_.4} parent=27 // pred_check_branch
        %428 = sbr.rel (%p426) target = $region56
      $region55: #{_lambda_.4} parent=27 // pred_region
        %p429 = scmp.lt.s32.totalorder %s25, 1
        %s430 = scalar_select %p429, %s25, 1
        %p431 = scmp.lt.s32.totalorder %s26, 0
        %s432 = scalar_select %p431, %s26, 0
        %s433 = smul.addr %s430, 8
        %s434 = sadd.s32 %s432, %s433
        %s435 = smul.addr %s434, 4
        %s436 = scalar_lea.vmem %s9, %s435
      $region56: #{_lambda_.4} parent=27 // pred_fallthru
        _
      // Predicated region
      $region57: #{_lambda_.4} parent=27 // pred_check
        %p437 = pneg %p299
      $region58: #{_lambda_.4} parent=27 // pred_check_branch
        %439 = sbr.rel (%p437) target = $region60
      $region59: #{_lambda_.4} parent=27 // pred_region
        %p440 = scmp.lt.s32.totalorder %s25, 1
        %s441 = scalar_select %p440, %s25, 1
        %p442 = scmp.lt.s32.totalorder %s26, 0
        %s443 = scalar_select %p442, %s26, 0
        %s444 = smul.addr %s441, 8
        %s445 = sadd.s32 %s443, %s444
        %s446 = smul.addr %s445, 4
        %s447 = scalar_lea.vmem %s10, %s446
      $region60: #{_lambda_.4} parent=27 // pred_fallthru
        _
      // Predicated region
      $region61: #{_lambda_.4} parent=27 // pred_check
        %p448 = pneg %p327
      $region62: #{_lambda_.4} parent=27 // pred_check_branch
        %450 = sbr.rel (%p448) target = $region64
      $region63: #{_lambda_.4} parent=27 // pred_region
        %s451 = smul.u32 16, %s26
        %p452 = scmp.lt.s32.totalorder %s25, 1
        %s453 = scalar_select %p452, %s25, 1
        %p454 = scmp.lt.s32.totalorder %s451, 15
        %s455 = scalar_select %p454, %s451, 15
        %s456 = smul.addr %s453, 16
        %s457 = sadd.s32 %s455, %s456
        %s458 = smul.addr %s457, 4
        %s459 = scalar_lea.vmem %s11, %s458
        %s460 = smul.u32 16, %s26
      $region64: #{_lambda_.4} parent=27 // pred_fallthru
        _
    $region28: #{_lambda_.4} parent=5 // pred_fallthru
      _
    %p461 = scmp.le.s32.totalorder 1, %s18
    %p462 = scmp.lt.s32.totalorder %s18, 3
    %p463 = pnand %p461, %p462
    %p464 = pneg %p463
    // Predicated region
    $region65: #{_lambda_.4} parent=5 // pred_check
      _
    $region66: #{_lambda_.4} parent=5 // pred_check_branch
      %466 = sbr.rel (%p463) target = $region68
    $region67: #{_lambda_.4} parent=5 // pred_region
      %s467 = ssub.s32 %s18, 1
      %p468 = pneg %p51
      %p469 = pneg %p48
      %p470 = pneg %p72
      %p471 = pneg %p69
      %p472 = pneg %p93
      %p473 = pneg %p90
      %p474 = scmp.lt.s32.totalorder %s27, 1
      %s475 = scalar_select %p474, %s27, 1
      %s476 = scalar_lea.vmem %s3, %s475
      %p477 = pneg %p119
      %p478 = pneg %p116
      %p479 = scmp.lt.s32.totalorder %s27, 1
      %s480 = scalar_select %p479, %s27, 1
      %s481 = scalar_lea.vmem %s4, %s480
      %p482 = pneg %p145
      %p483 = pneg %p142
      %p484 = scmp.lt.s32.totalorder %s27, 1
      %s485 = scalar_select %p484, %s27, 1
      %s486 = smul.addr %s485, 8
      %s487 = smul.addr %s486, 4
      %s488 = scalar_lea.vmem %s5, %s487
      %p489 = pneg %p171
      %p490 = pneg %p168
      %p491 = scmp.lt.s32.totalorder %s27, 1
      %s492 = scalar_select %p491, %s27, 1
      %s493 = smul.addr %s492, 8
      %s494 = smul.addr %s493, 4
      %s495 = scalar_lea.vmem %s6, %s494
      %p496 = pneg %p197
      %p497 = pneg %p194
      %p498 = scmp.lt.s32.totalorder %s27, 1
      %s499 = scalar_select %p498, %s27, 1
      %s500 = smul.addr %s499, 8
      %s501 = smul.addr %s500, 4
      %s502 = scalar_lea.vmem %s7, %s501
      %p503 = pneg %p223
      %p504 = pneg %p220
      %p505 = scmp.lt.s32.totalorder %s27, 1
      %s506 = scalar_select %p505, %s27, 1
      %s507 = smul.addr %s506, 8
      %s508 = smul.addr %s507, 4
      %s509 = scalar_lea.vmem %s8, %s508
      %p510 = pneg %p249
      %p511 = pneg %p246
      %p512 = scmp.lt.s32.totalorder %s27, 1
      %s513 = scalar_select %p512, %s27, 1
      %p514 = scmp.lt.s32.totalorder %s28, 0
      %s515 = scalar_select %p514, %s28, 0
      %s516 = smul.addr %s513, 8
      %s517 = sadd.s32 %s515, %s516
      %s518 = smul.addr %s517, 4
      %s519 = scalar_lea.vmem %s9, %s518
      %p520 = pneg %p277
      %p521 = pneg %p274
      %p522 = scmp.lt.s32.totalorder %s27, 1
      %s523 = scalar_select %p522, %s27, 1
      %p524 = scmp.lt.s32.totalorder %s28, 0
      %s525 = scalar_select %p524, %s28, 0
      %s526 = smul.addr %s523, 8
      %s527 = sadd.s32 %s525, %s526
      %s528 = smul.addr %s527, 4
      %s529 = scalar_lea.vmem %s10, %s528
      %p530 = pneg %p305
      %p531 = pneg %p302
      %s532 = smul.u32 16, %s28
      %p533 = scmp.lt.s32.totalorder %s27, 1
      %s534 = scalar_select %p533, %s27, 1
      %p535 = scmp.lt.s32.totalorder %s532, 15
      %s536 = scalar_select %p535, %s532, 15
      %s537 = smul.addr %s534, 16
      %s538 = sadd.s32 %s536, %s537
      %s539 = smul.addr %s538, 4
      %s540 = scalar_lea.vmem %s11, %s539
      %p541 = pneg %p333
      %p542 = pneg %p330
      %p543 = pneg %p354
      %p544 = pneg %p351
      %p545 = scmp.lt.s32.totalorder %s27, 1
      %s546 = scalar_select %p545, %s27, 1
      %s547 = scalar_lea.vmem %s3, %s546
      %p548 = scmp.lt.s32.totalorder %s27, 1
      %s549 = scalar_select %p548, %s27, 1
      %s550 = scalar_lea.vmem %s4, %s549
      %p551 = scmp.lt.s32.totalorder %s27, 1
      %s552 = scalar_select %p551, %s27, 1
      %s553 = smul.addr %s552, 8
      %s554 = smul.addr %s553, 4
      %s555 = scalar_lea.vmem %s5, %s554
      %p556 = scmp.lt.s32.totalorder %s27, 1
      %s557 = scalar_select %p556, %s27, 1
      %s558 = smul.addr %s557, 8
      %s559 = smul.addr %s558, 4
      %s560 = scalar_lea.vmem %s6, %s559
      %p561 = scmp.lt.s32.totalorder %s27, 1
      %s562 = scalar_select %p561, %s27, 1
      %s563 = smul.addr %s562, 8
      %s564 = smul.addr %s563, 4
      %s565 = scalar_lea.vmem %s7, %s564
      %p566 = scmp.lt.s32.totalorder %s27, 1
      %s567 = scalar_select %p566, %s27, 1
      %s568 = smul.addr %s567, 8
      %s569 = smul.addr %s568, 4
      %s570 = scalar_lea.vmem %s8, %s569
      %p571 = scmp.lt.s32.totalorder %s27, 1
      %s572 = scalar_select %p571, %s27, 1
      %p573 = scmp.lt.s32.totalorder %s28, 0
      %s574 = scalar_select %p573, %s28, 0
      %s575 = smul.addr %s572, 8
      %s576 = sadd.s32 %s574, %s575
      %s577 = smul.addr %s576, 4
      %s578 = scalar_lea.vmem %s9, %s577
      %p579 = scmp.lt.s32.totalorder %s27, 1
      %s580 = scalar_select %p579, %s27, 1
      %p581 = scmp.lt.s32.totalorder %s28, 0
      %s582 = scalar_select %p581, %s28, 0
      %s583 = smul.addr %s580, 8
      %s584 = sadd.s32 %s582, %s583
      %s585 = smul.addr %s584, 4
      %s586 = scalar_lea.vmem %s10, %s585
      %s587 = smul.u32 16, %s28
      %p588 = scmp.lt.s32.totalorder %s27, 1
      %s589 = scalar_select %p588, %s27, 1
      %p590 = scmp.lt.s32.totalorder %s587, 15
      %s591 = scalar_select %p590, %s587, 15
      %s592 = smul.addr %s589, 16
      %s593 = sadd.s32 %s591, %s592
      %s594 = smul.addr %s593, 4
      %s595 = scalar_lea.vmem %s11, %s594
      %s596 = smul.u32 16, %s28
      %p598 = scmp.eq.s32.totalorder %s27, 0
      %p599 = scmp.eq.s32.totalorder %s28, 0
      %p600 = pnand %p598, %p599
      %p601 = pneg %p600
      // Predicated region
      $region69: #{_lambda_.4} parent=67 // pred_check
        _
      $region70: #{_lambda_.4} parent=67 // pred_check_branch
        %603 = sbr.rel (%p600) target = $region72
      $region71: #{_lambda_.4} parent=67 // pred_region
        %v604 = vld [vmem:[%s0] sm:$0xff]
        %v605 = vld [vmem:[%s0 + $0x8] sm:$0xff]
        %vm606 = vcmask 523264
        %607 = vst.msk [vmem:[%s12] sm:$0xff] %vm606, %v604
        %608 = vst.msk [vmem:[%s12 + $0x8] sm:$0xff] %vm606, %v605
      $region72: #{_lambda_.4} parent=67 // pred_fallthru
        _
      // Predicated region
      $region73: #{_lambda_.4} parent=67 // pred_check
        %p609 = pneg %p599
      $region74: #{_lambda_.4} parent=67 // pred_check_branch
        %611 = sbr.rel (%p609) target = $region76
      $region75: #{_lambda_.4} parent=67 // pred_region
        %v612 = vld [vmem:[%s12] sm:$0xff]
        %v613 = vld [vmem:[%s12 + $0x8] sm:$0xff]
        %v614 = vmul.f32 %v612, %v612
        %v615 = vmul.f32 %v613, %v613
        %vm616 = vcmask 523264
        %v617 = vsel %vm616, %v614, 0.0
        %618 = vadd.xlane.f32.xlu0 %v617
        %v619 = vpop.xlane.xlu0 %618
        %v620 = vsel %vm616, %v615, 0.0
        %621 = vadd.xlane.f32.xlu0 %v620
        %v622 = vpop.xlane.xlu0 %621
        %v623 = vrcp.pop 64.0
        %v624 = vmul.f32 64.0, %v623
        %v625 = vsub.f32 1.0, %v624
        %v626 = vmul.f32 %v623, %v625
        %v627 = vadd.f32 %v623, %v626
        %vm628 = vweird.f32 %v623
        %v629 = vsel %vm628, %v623, %v627
        %v630 = vmul.f32 %v619, %v629
        %v631 = vmul.f32 %v622, %v629
        %v632 = vadd.f32 %v630, 1e-05
        %v633 = vadd.f32 %v631, 1e-05
        %v634 = vrsqrt.pop %v632
        %v635 = vmul.f32 %v634, %v632
        %v636 = vmul.f32 %v635, %v634
        %v637 = vmul.f32 0.5, %v636
        %v638 = vsub.f32 1.5, %v637
        %v639 = vmul.f32 %v634, %v638
        %vm640 = vweird.f32 %v632
        %vm641 = vweird.f32 %v634
        %vm642 = vmor %vm640, %vm641
        %v643 = vsel %vm642, %v634, %v639
        %v644 = vrsqrt.pop %v633
        %v645 = vmul.f32 %v644, %v633
        %v646 = vmul.f32 %v645, %v644
        %v647 = vmul.f32 0.5, %v646
        %v648 = vsub.f32 1.5, %v647
        %v649 = vmul.f32 %v644, %v648
        %vm650 = vweird.f32 %v633
        %vm651 = vweird.f32 %v644
        %vm652 = vmor %vm650, %vm651
        %v653 = vsel %vm652, %v644, %v649
        %v654 = vmul.f32 %v612, %v643
        %v655 = vmul.f32 %v613, %v653
        %v656 = vld [vmem:[%s547] sm:$0x1]
        %v658 = vperm.slane %v656, 0
        %v660 = vmul.f32 %v654, %v658
        %v661 = vmul.f32 %v655, %v658
        %v662 = vpack.c.bf16 %v661, %v660
        %v663 = vld [vmem:[%s555] sm:$0xf]
        %v664 = vld [vmem:[%s555 + $0x4] sm:$0xf]
        %v665 = vld [vmem:[%s555 + $0x8] sm:$0xf]
        %v666 = vld [vmem:[%s555 + $0xc] sm:$0xf]
        %v667 = vld [vmem:[%s555 + $0x10] sm:$0xf]
        %v668 = vld [vmem:[%s555 + $0x14] sm:$0xf]
        %v669 = vld [vmem:[%s555 + $0x18] sm:$0xf]
        %v670 = vld [vmem:[%s555 + $0x1c] sm:$0xf]
        %v679 = vunpack.c.l.b16 %v663
        %v680 = vunpack.c.l.b16 %v664
        %v681 = vunpack.c.l.b16 %v665
        %v682 = vunpack.c.l.b16 %v666
        %v683 = vunpack.c.l.b16 %v667
        %v684 = vunpack.c.l.b16 %v668
        %v685 = vunpack.c.l.b16 %v669
        %v686 = vunpack.c.l.b16 %v670
        %v687 = vpack.c.b16 %v680, %v679
        %v688 = vpack.c.b16 %v682, %v681
        %v689 = vpack.c.b16 %v684, %v683
        %v690 = vpack.c.b16 %v686, %v685
        %v696 = vsel %vm616, %v662, 0
        %698 = vmatpush.bf16.msra.mxu0 0
        %699 = vmatpush.bf16.msra.mxu0 0
        %700 = vmatpush.bf16.msra.mxu0 0
        %701 = vmatpush.bf16.msra.mxu0 0
        %702 = vmatpush.bf16.msra.mxu0 %v690
        %703 = vmatpush.bf16.msra.mxu0 %v689
        %704 = vmatpush.bf16.msra.mxu0 %v688
        %705 = vmatpush.bf16.msra.mxu0 %v687
        %706 = vmatmul.bf16.gmra.mxu0 %v696
        %v707 = vpop.f32.mrf.mxu0
        %v708 = vadd.f32 0.0, %v707
        %v709 = vpop.f32.mrf.mxu0
        %v710 = vadd.f32 0.0, %v709
        %711 = vdwg.mxu0
        %v712 = vld [vmem:[%s560] sm:$0xf]
        %v713 = vld [vmem:[%s560 + $0x4] sm:$0xf]
        %v714 = vld [vmem:[%s560 + $0x8] sm:$0xf]
        %v715 = vld [vmem:[%s560 + $0xc] sm:$0xf]
        %v716 = vld [vmem:[%s560 + $0x10] sm:$0xf]
        %v717 = vld [vmem:[%s560 + $0x14] sm:$0xf]
        %v718 = vld [vmem:[%s560 + $0x18] sm:$0xf]
        %v719 = vld [vmem:[%s560 + $0x1c] sm:$0xf]
        %v728 = vunpack.c.l.b16 %v712
        %v729 = vunpack.c.l.b16 %v713
        %v730 = vunpack.c.l.b16 %v714
        %v731 = vunpack.c.l.b16 %v715
        %v732 = vunpack.c.l.b16 %v716
        %v733 = vunpack.c.l.b16 %v717
        %v734 = vunpack.c.l.b16 %v718
        %v735 = vunpack.c.l.b16 %v719
        %v736 = vpack.c.b16 %v729, %v728
        %v737 = vpack.c.b16 %v731, %v730
        %v738 = vpack.c.b16 %v733, %v732
        %v739 = vpack.c.b16 %v735, %v734
        %744 = vmatpush.bf16.msra.mxu0 0
        %745 = vmatpush.bf16.msra.mxu0 0
        %746 = vmatpush.bf16.msra.mxu0 0
        %747 = vmatpush.bf16.msra.mxu0 0
        %748 = vmatpush.bf16.msra.mxu0 %v739
        %749 = vmatpush.bf16.msra.mxu0 %v738
        %750 = vmatpush.bf16.msra.mxu0 %v737
        %751 = vmatpush.bf16.msra.mxu0 %v736
        %752 = vmatmul.bf16.gmra.mxu0 %v696
        %v753 = vpop.f32.mrf.mxu0
        %v754 = vadd.f32 0.0, %v753
        %v755 = vpop.f32.mrf.mxu0
        %v756 = vadd.f32 0.0, %v755
        %757 = vdwg.mxu0
        %v758 = vld [vmem:[%s565] sm:$0xf]
        %v759 = vld [vmem:[%s565 + $0x4] sm:$0xf]
        %v760 = vld [vmem:[%s565 + $0x8] sm:$0xf]
        %v761 = vld [vmem:[%s565 + $0xc] sm:$0xf]
        %v762 = vld [vmem:[%s565 + $0x10] sm:$0xf]
        %v763 = vld [vmem:[%s565 + $0x14] sm:$0xf]
        %v764 = vld [vmem:[%s565 + $0x18] sm:$0xf]
        %v765 = vld [vmem:[%s565 + $0x1c] sm:$0xf]
        %v774 = vunpack.c.l.b16 %v758
        %v775 = vunpack.c.l.b16 %v759
        %v776 = vunpack.c.l.b16 %v760
        %v777 = vunpack.c.l.b16 %v761
        %v778 = vunpack.c.l.b16 %v762
        %v779 = vunpack.c.l.b16 %v763
        %v780 = vunpack.c.l.b16 %v764
        %v781 = vunpack.c.l.b16 %v765
        %v782 = vpack.c.b16 %v775, %v774
        %v783 = vpack.c.b16 %v777, %v776
        %v784 = vpack.c.b16 %v779, %v778
        %v785 = vpack.c.b16 %v781, %v780
        %790 = vmatpush.bf16.msra.mxu0 0
        %791 = vmatpush.bf16.msra.mxu0 0
        %792 = vmatpush.bf16.msra.mxu0 0
        %793 = vmatpush.bf16.msra.mxu0 0
        %794 = vmatpush.bf16.msra.mxu0 %v785
        %795 = vmatpush.bf16.msra.mxu0 %v784
        %796 = vmatpush.bf16.msra.mxu0 %v783
        %797 = vmatpush.bf16.msra.mxu0 %v782
        %798 = vmatmul.bf16.gmra.mxu0 %v696
        %v799 = vpop.f32.mrf.mxu0
        %v800 = vadd.f32 0.0, %v799
        %v801 = vpop.f32.mrf.mxu0
        %v802 = vadd.f32 0.0, %v801
        %803 = vdwg.mxu0
        %v804 = vld [vmem:[%s1] sm:$0xff]
        %v805 = vld [vmem:[%s2] sm:$0xff]
        %v806 = vlaneseq
        %v807 = vshrl.u32 %v806, 7
        %v808 = vlaneseq
        %v809 = vand.u32 %v808, 127
        %vm810 = vcmp.le.s32.totalorder %v809, %v807
        %v811 = vsub.f32 0.0, %v754
        %813 = vrot.lane.b32.xlu0 %v811, 120
        %v814 = vpop.permute.xlu0 %813
        %817 = vrot.lane.b32.xlu0 %v754, 8
        %v818 = vpop.permute.xlu0 %817
        %vm820 = vcmask 64512
        %v821 = vsel %vm820, %v814, %v818
        %v822 = vmul.f32 %v754, %v804
        %v823 = vmul.f32 %v821, %v805
        %v824 = vadd.f32 %v822, %v823
        %v825 = vpack.c.bf16 %v800, %v800
        %v826 = vsub.f32 0.0, %v708
        %828 = vrot.lane.b32.xlu0 %v826, 120
        %v829 = vpop.permute.xlu0 %828
        %832 = vrot.lane.b32.xlu0 %v708, 8
        %v833 = vpop.permute.xlu0 %832
        %v835 = vsel %vm820, %v829, %v833
        %v836 = vmul.f32 %v708, %v804
        %v837 = vmul.f32 %v835, %v805
        %v838 = vadd.f32 %v836, %v837
        %vm839 = vcmask 130048
        %v841 = vsel %vm839, %v838, 0
        %v844 = vsel %vm839, %v824, 0
        %846 = vmatpush.xpose.msra.mxu0 0.0
        %847 = vmatpush.xpose.msra.mxu0 0.0
        %848 = vmatpush.xpose.msra.mxu0 0.0
        %849 = vmatpush.xpose.msra.mxu0 0.0
        %850 = vmatpush.xpose.msra.mxu0 0.0
        %851 = vmatpush.xpose.msra.mxu0 0.0
        %852 = vmatpush.xpose.msra.mxu0 0.0
        %853 = vmatpush.xpose.msra.mxu0 0.0
        %854 = vmatpush.xpose.msra.mxu0 0.0
        %855 = vmatpush.xpose.msra.mxu0 0.0
        %856 = vmatpush.xpose.msra.mxu0 0.0
        %857 = vmatpush.xpose.msra.mxu0 0.0
        %858 = vmatpush.xpose.msra.mxu0 0.0
        %859 = vmatpush.xpose.msra.mxu0 0.0
        %860 = vmatpush.xpose.msra.mxu0 0.0
        %861 = vmatpush.xpose.msra.mxu0 %v844
        %862 = vmatmul.f32.gmra.mxu0 %v841
        %v863 = vpop.f32.mrf.mxu0
        %v864 = vadd.f32 0.0, %v863
        %865 = vdwg.mxu0
        %v866 = vmul.f32 %v864, 0.25
        %v867 = vsel %vm810, %v866, -1e+30
        %v868 = vsel %vm820, %v867, -inf
        %869 = vmax.xlane.f32.xlu0 %v868
        %v870 = vpop.xlane.xlu0 %869
        %v871 = vsub.f32 %v867, %v870
        %v872 = vmul.f32 %v871, 1.442695
        %v873 = vpow.pop %v872
        %v874 = vsel %vm820, %v873, 0.0
        %875 = vadd.xlane.f32.xlu0 %v874
        %v876 = vpop.xlane.xlu0 %875
        %v877 = vrcp.pop %v876
        %v878 = vmul.f32 %v873, %v877
        %v879 = vpack.c.bf16 %v878, %v878
        %v881 = vsel %vm820, %v879, 0
        %vm883 = vcmask 1043456
        %v885 = vsel %vm883, %v825, 0
        %887 = vmatpush.bf16.msra.mxu0 0
        %888 = vmatpush.bf16.msra.mxu0 0
        %889 = vmatpush.bf16.msra.mxu0 0
        %890 = vmatpush.bf16.msra.mxu0 0
        %891 = vmatpush.bf16.msra.mxu0 0
        %892 = vmatpush.bf16.msra.mxu0 0
        %893 = vmatpush.bf16.msra.mxu0 0
        %894 = vmatpush.bf16.msra.mxu0 %v885
        %895 = vmatmul.bf16.gmra.mxu0 %v881
        %v896 = vpop.f32.mrf.mxu0
        %v897 = vadd.f32 0.0, %v896
        %v898 = vpop.f32.mrf.mxu0
        %899 = vdwg.mxu0
        %v900 = vpack.c.bf16 %v897, %v897
        %vm901 = vcmask 125952
        %902 = vst.msk [vmem:[#allocation2] sm:$0xf] %vm901, %v900
        %903 = vrot.lane.b32.xlu0 %v826, 104
        %v904 = vpop.permute.xlu0 %903
        %906 = vrot.lane.b32.xlu0 %v708, 120
        %v907 = vpop.permute.xlu0 %906
        %v909 = vsel %vm820, %v904, %v907
        %911 = vrot.lane.b32.xlu0 %v804, 16
        %v912 = vpop.permute.xlu0 %911
        %v914 = vmul.f32 %v708, %v912
        %v915 = vmul.f32 %v909, %v805
        %917 = vrot.lane.b32.xlu0 %v915, 16
        %v918 = vpop.permute.xlu0 %917
        %v920 = vadd.f32 %v914, %v918
        %922 = vrot.lane.b32.xlu0 %v920, 112
        %v923 = vpop.permute.xlu0 %922
        %v924 = vsel %vm839, %v923, 0
        %926 = vmatpush.xpose.msra.mxu0 0.0
        %927 = vmatpush.xpose.msra.mxu0 0.0
        %928 = vmatpush.xpose.msra.mxu0 0.0
        %929 = vmatpush.xpose.msra.mxu0 0.0
        %930 = vmatpush.xpose.msra.mxu0 0.0
        %931 = vmatpush.xpose.msra.mxu0 0.0
        %932 = vmatpush.xpose.msra.mxu0 0.0
        %933 = vmatpush.xpose.msra.mxu0 0.0
        %934 = vmatpush.xpose.msra.mxu0 0.0
        %935 = vmatpush.xpose.msra.mxu0 0.0
        %936 = vmatpush.xpose.msra.mxu0 0.0
        %937 = vmatpush.xpose.msra.mxu0 0.0
        %938 = vmatpush.xpose.msra.mxu0 0.0
        %939 = vmatpush.xpose.msra.mxu0 0.0
        %940 = vmatpush.xpose.msra.mxu0 0.0
        %941 = vmatpush.xpose.msra.mxu0 %v844
        %942 = vmatmul.f32.gmra.mxu0 %v924
        %v943 = vpop.f32.mrf.mxu0
        %v944 = vadd.f32 0.0, %v943
        %945 = vdwg.mxu0
        %v946 = vmul.f32 %v944, 0.25
        %v947 = vsel %vm810, %v946, -1e+30
        %v948 = vsel %vm820, %v947, -inf
        %949 = vmax.xlane.f32.xlu0 %v948
        %v950 = vpop.xlane.xlu0 %949
        %v951 = vsub.f32 %v947, %v950
        %v952 = vmul.f32 %v951, 1.442695
        %v953 = vpow.pop %v952
        %v954 = vsel %vm820, %v953, 0.0
        %955 = vadd.xlane.f32.xlu0 %v954
        %v956 = vpop.xlane.xlu0 %955
        %v957 = vrcp.pop %v956
        %v958 = vmul.f32 %v953, %v957
        %v959 = vpack.c.bf16 %v958, %v958
        %v961 = vsel %vm820, %v959, 0
        %963 = vmatpush.bf16.msra.mxu0 0
        %964 = vmatpush.bf16.msra.mxu0 0
        %965 = vmatpush.bf16.msra.mxu0 0
        %966 = vmatpush.bf16.msra.mxu0 0
        %967 = vmatpush.bf16.msra.mxu0 0
        %968 = vmatpush.bf16.msra.mxu0 0
        %969 = vmatpush.bf16.msra.mxu0 0
        %970 = vmatpush.bf16.msra.mxu0 %v885
        %971 = vmatmul.bf16.gmra.mxu0 %v961
        %v972 = vpop.f32.mrf.mxu0
        %v973 = vadd.f32 0.0, %v972
        %v974 = vpop.f32.mrf.mxu0
        %975 = vdwg.mxu0
        %v976 = vpack.c.bf16 %v973, %v973
        %978 = vrot.lane.b32.xlu0 %v976, 16
        %v979 = vpop.permute.xlu0 %978
        %vm981 = vcmask 257152
        %982 = vst.msk [vmem:[#allocation2] sm:$0xf] %vm981, %v979
        %983 = vrot.lane.b32.xlu0 %v811, 104
        %v984 = vpop.permute.xlu0 %983
        %986 = vrot.lane.b32.xlu0 %v754, 120
        %v987 = vpop.permute.xlu0 %986
        %v989 = vsel %vm820, %v984, %v987
        %v990 = vmul.f32 %v754, %v912
        %v991 = vmul.f32 %v989, %v805
        %993 = vrot.lane.b32.xlu0 %v991, 16
        %v994 = vpop.permute.xlu0 %993
        %v996 = vadd.f32 %v990, %v994
        %997 = vrot.lane.b32.xlu0 %v826, 88
        %v998 = vpop.permute.xlu0 %997
        %1000 = vrot.lane.b32.xlu0 %v708, 104
        %v1001 = vpop.permute.xlu0 %1000
        %v1003 = vsel %vm820, %v998, %v1001
        %1004 = vrot.lane.b32.xlu0 %v804, 32
        %v1005 = vpop.permute.xlu0 %1004
        %v1007 = vmul.f32 %v708, %v1005
        %v1008 = vmul.f32 %v1003, %v805
        %1010 = vrot.lane.b32.xlu0 %v1008, 32
        %v1011 = vpop.permute.xlu0 %1010
        %v1013 = vadd.f32 %v1007, %v1011
        %1015 = vrot.lane.b32.xlu0 %v1013, 96
        %v1016 = vpop.permute.xlu0 %1015
        %1018 = vrot.lane.b32.xlu0 %v996, 112
        %v1019 = vpop.permute.xlu0 %1018
        %v1020 = vsel %vm839, %v1016, 0
        %v1022 = vsel %vm839, %v1019, 0
        %1024 = vmatpush.xpose.msra.mxu0 0.0
        %1025 = vmatpush.xpose.msra.mxu0 0.0
        %1026 = vmatpush.xpose.msra.mxu0 0.0
        %1027 = vmatpush.xpose.msra.mxu0 0.0
        %1028 = vmatpush.xpose.msra.mxu0 0.0
        %1029 = vmatpush.xpose.msra.mxu0 0.0
        %1030 = vmatpush.xpose.msra.mxu0 0.0
        %1031 = vmatpush.xpose.msra.mxu0 0.0
        %1032 = vmatpush.xpose.msra.mxu0 0.0
        %1033 = vmatpush.xpose.msra.mxu0 0.0
        %1034 = vmatpush.xpose.msra.mxu0 0.0
        %1035 = vmatpush.xpose.msra.mxu0 0.0
        %1036 = vmatpush.xpose.msra.mxu0 0.0
        %1037 = vmatpush.xpose.msra.mxu0 0.0
        %1038 = vmatpush.xpose.msra.mxu0 0.0
        %1039 = vmatpush.xpose.msra.mxu0 %v1022
        %1040 = vmatmul.f32.gmra.mxu0 %v1020
        %v1041 = vpop.f32.mrf.mxu0
        %v1042 = vadd.f32 0.0, %v1041
        %1043 = vdwg.mxu0
        %v1044 = vmul.f32 %v1042, 0.25
        %v1045 = vsel %vm810, %v1044, -1e+30
        %v1046 = vsel %vm820, %v1045, -inf
        %1047 = vmax.xlane.f32.xlu0 %v1046
        %v1048 = vpop.xlane.xlu0 %1047
        %v1049 = vsub.f32 %v1045, %v1048
        %v1050 = vmul.f32 %v1049, 1.442695
        %v1051 = vpow.pop %v1050
        %v1052 = vsel %vm820, %v1051, 0.0
        %1053 = vadd.xlane.f32.xlu0 %v1052
        %v1054 = vpop.xlane.xlu0 %1053
        %v1055 = vrcp.pop %v1054
        %v1056 = vmul.f32 %v1051, %v1055
        %v1057 = vpack.c.bf16 %v1056, %v1056
        %1059 = vrot.lane.b32.xlu0 %v825, 112
        %v1060 = vpop.permute.xlu0 %1059
        %v1062 = vsel %vm820, %v1057, 0
        %v1065 = vsel %vm883, %v1060, 0
        %1067 = vmatpush.bf16.msra.mxu0 0
        %1068 = vmatpush.bf16.msra.mxu0 0
        %1069 = vmatpush.bf16.msra.mxu0 0
        %1070 = vmatpush.bf16.msra.mxu0 0
        %1071 = vmatpush.bf16.msra.mxu0 0
        %1072 = vmatpush.bf16.msra.mxu0 0
        %1073 = vmatpush.bf16.msra.mxu0 0
        %1074 = vmatpush.bf16.msra.mxu0 %v1065
        %1075 = vmatmul.bf16.gmra.mxu0 %v1062
        %v1076 = vpop.f32.mrf.mxu0
        %v1077 = vadd.f32 0.0, %v1076
        %v1078 = vpop.f32.mrf.mxu0
        %1079 = vdwg.mxu0
        %v1080 = vpack.c.bf16 %v1077, %v1077
        %1082 = vrot.lane.b32.xlu0 %v1080, 32
        %v1083 = vpop.permute.xlu0 %1082
        %vm1085 = vcmask 388352
        %1086 = vst.msk [vmem:[#allocation2] sm:$0xf] %vm1085, %v1083
        %1087 = vrot.lane.b32.xlu0 %v826, 72
        %v1088 = vpop.permute.xlu0 %1087
        %1090 = vrot.lane.b32.xlu0 %v708, 88
        %v1091 = vpop.permute.xlu0 %1090
        %v1093 = vsel %vm820, %v1088, %v1091
        %1094 = vrot.lane.b32.xlu0 %v804, 48
        %v1095 = vpop.permute.xlu0 %1094
        %v1097 = vmul.f32 %v708, %v1095
        %v1098 = vmul.f32 %v1093, %v805
        %1100 = vrot.lane.b32.xlu0 %v1098, 48
        %v1101 = vpop.permute.xlu0 %1100
        %v1103 = vadd.f32 %v1097, %v1101
        %1105 = vrot.lane.b32.xlu0 %v1103, 80
        %v1106 = vpop.permute.xlu0 %1105
        %v1107 = vsel %vm839, %v1106, 0
        %1109 = vmatpush.xpose.msra.mxu0 0.0
        %1110 = vmatpush.xpose.msra.mxu0 0.0
        %1111 = vmatpush.xpose.msra.mxu0 0.0
        %1112 = vmatpush.xpose.msra.mxu0 0.0
        %1113 = vmatpush.xpose.msra.mxu0 0.0
        %1114 = vmatpush.xpose.msra.mxu0 0.0
        %1115 = vmatpush.xpose.msra.mxu0 0.0
        %1116 = vmatpush.xpose.msra.mxu0 0.0
        %1117 = vmatpush.xpose.msra.mxu0 0.0
        %1118 = vmatpush.xpose.msra.mxu0 0.0
        %1119 = vmatpush.xpose.msra.mxu0 0.0
        %1120 = vmatpush.xpose.msra.mxu0 0.0
        %1121 = vmatpush.xpose.msra.mxu0 0.0
        %1122 = vmatpush.xpose.msra.mxu0 0.0
        %1123 = vmatpush.xpose.msra.mxu0 0.0
        %1124 = vmatpush.xpose.msra.mxu0 %v1022
        %1125 = vmatmul.f32.gmra.mxu0 %v1107
        %v1126 = vpop.f32.mrf.mxu0
        %v1127 = vadd.f32 0.0, %v1126
        %1128 = vdwg.mxu0
        %v1129 = vmul.f32 %v1127, 0.25
        %v1130 = vsel %vm810, %v1129, -1e+30
        %v1131 = vsel %vm820, %v1130, -inf
        %1132 = vmax.xlane.f32.xlu0 %v1131
        %v1133 = vpop.xlane.xlu0 %1132
        %v1134 = vsub.f32 %v1130, %v1133
        %v1135 = vmul.f32 %v1134, 1.442695
        %v1136 = vpow.pop %v1135
        %v1137 = vsel %vm820, %v1136, 0.0
        %1138 = vadd.xlane.f32.xlu0 %v1137
        %v1139 = vpop.xlane.xlu0 %1138
        %v1140 = vrcp.pop %v1139
        %v1141 = vmul.f32 %v1136, %v1140
        %v1142 = vpack.c.bf16 %v1141, %v1141
        %v1144 = vsel %vm820, %v1142, 0
        %1146 = vmatpush.bf16.msra.mxu0 0
        %1147 = vmatpush.bf16.msra.mxu0 0
        %1148 = vmatpush.bf16.msra.mxu0 0
        %1149 = vmatpush.bf16.msra.mxu0 0
        %1150 = vmatpush.bf16.msra.mxu0 0
        %1151 = vmatpush.bf16.msra.mxu0 0
        %1152 = vmatpush.bf16.msra.mxu0 0
        %1153 = vmatpush.bf16.msra.mxu0 %v1065
        %1154 = vmatmul.bf16.gmra.mxu0 %v1144
        %v1155 = vpop.f32.mrf.mxu0
        %v1156 = vadd.f32 0.0, %v1155
        %v1157 = vpop.f32.mrf.mxu0
        %1158 = vdwg.mxu0
        %v1159 = vpack.c.bf16 %v1156, %v1156
        %1161 = vrot.lane.b32.xlu0 %v1159, 48
        %v1162 = vpop.permute.xlu0 %1161
        %vm1164 = vcmask 519552
        %1165 = vst.msk [vmem:[#allocation2] sm:$0xf] %vm1164, %v1162
        %v1166 = vsub.f32 0.0, %v756
        %1168 = vrot.lane.b32.xlu0 %v1166, 120
        %v1169 = vpop.permute.xlu0 %1168
        %1172 = vrot.lane.b32.xlu0 %v756, 8
        %v1173 = vpop.permute.xlu0 %1172
        %v1175 = vsel %vm820, %v1169, %v1173
        %v1176 = vmul.f32 %v756, %v804
        %v1177 = vmul.f32 %v1175, %v805
        %v1178 = vadd.f32 %v1176, %v1177
        %v1179 = vpack.c.bf16 %v802, %v802
        %v1180 = vsub.f32 0.0, %v710
        %1182 = vrot.lane.b32.xlu0 %v1180, 120
        %v1183 = vpop.permute.xlu0 %1182
        %1186 = vrot.lane.b32.xlu0 %v710, 8
        %v1187 = vpop.permute.xlu0 %1186
        %v1189 = vsel %vm820, %v1183, %v1187
        %v1190 = vmul.f32 %v710, %v804
        %v1191 = vmul.f32 %v1189, %v805
        %v1192 = vadd.f32 %v1190, %v1191
        %v1194 = vsel %vm839, %v1192, 0
        %v1197 = vsel %vm839, %v1178, 0
        %1199 = vmatpush.xpose.msra.mxu0 0.0
        %1200 = vmatpush.xpose.msra.mxu0 0.0
        %1201 = vmatpush.xpose.msra.mxu0 0.0
        %1202 = vmatpush.xpose.msra.mxu0 0.0
        %1203 = vmatpush.xpose.msra.mxu0 0.0
        %1204 = vmatpush.xpose.msra.mxu0 0.0
        %1205 = vmatpush.xpose.msra.mxu0 0.0
        %1206 = vmatpush.xpose.msra.mxu0 0.0
        %1207 = vmatpush.xpose.msra.mxu0 0.0
        %1208 = vmatpush.xpose.msra.mxu0 0.0
        %1209 = vmatpush.xpose.msra.mxu0 0.0
        %1210 = vmatpush.xpose.msra.mxu0 0.0
        %1211 = vmatpush.xpose.msra.mxu0 0.0
        %1212 = vmatpush.xpose.msra.mxu0 0.0
        %1213 = vmatpush.xpose.msra.mxu0 0.0
        %1214 = vmatpush.xpose.msra.mxu0 %v1197
        %1215 = vmatmul.f32.gmra.mxu0 %v1194
        %v1216 = vpop.f32.mrf.mxu0
        %v1217 = vadd.f32 0.0, %v1216
        %1218 = vdwg.mxu0
        %v1219 = vmul.f32 %v1217, 0.25
        %v1220 = vsel %vm810, %v1219, -1e+30
        %v1221 = vsel %vm820, %v1220, -inf
        %1222 = vmax.xlane.f32.xlu0 %v1221
        %v1223 = vpop.xlane.xlu0 %1222
        %v1224 = vsub.f32 %v1220, %v1223
        %v1225 = vmul.f32 %v1224, 1.442695
        %v1226 = vpow.pop %v1225
        %v1227 = vsel %vm820, %v1226, 0.0
        %1228 = vadd.xlane.f32.xlu0 %v1227
        %v1229 = vpop.xlane.xlu0 %1228
        %v1230 = vrcp.pop %v1229
        %v1231 = vmul.f32 %v1226, %v1230
        %v1232 = vpack.c.bf16 %v1231, %v1231
        %v1234 = vsel %vm820, %v1232, 0
        %v1237 = vsel %vm883, %v1179, 0
        %1239 = vmatpush.bf16.msra.mxu0 0
        %1240 = vmatpush.bf16.msra.mxu0 0
        %1241 = vmatpush.bf16.msra.mxu0 0
        %1242 = vmatpush.bf16.msra.mxu0 0
        %1243 = vmatpush.bf16.msra.mxu0 0
        %1244 = vmatpush.bf16.msra.mxu0 0
        %1245 = vmatpush.bf16.msra.mxu0 0
        %1246 = vmatpush.bf16.msra.mxu0 %v1237
        %1247 = vmatmul.bf16.gmra.mxu0 %v1234
        %v1248 = vpop.f32.mrf.mxu0
        %v1249 = vadd.f32 0.0, %v1248
        %v1250 = vpop.f32.mrf.mxu0
        %1251 = vdwg.mxu0
        %v1252 = vpack.c.bf16 %v1249, %v1249
        %1253 = vst.msk [vmem:[#allocation2 + $0x4] sm:$0xf] %vm901, %v1252
        %1254 = vrot.lane.b32.xlu0 %v1180, 104
        %v1255 = vpop.permute.xlu0 %1254
        %1257 = vrot.lane.b32.xlu0 %v710, 120
        %v1258 = vpop.permute.xlu0 %1257
        %v1260 = vsel %vm820, %v1255, %v1258
        %v1261 = vmul.f32 %v710, %v912
        %v1262 = vmul.f32 %v1260, %v805
        %1264 = vrot.lane.b32.xlu0 %v1262, 16
        %v1265 = vpop.permute.xlu0 %1264
        %v1267 = vadd.f32 %v1261, %v1265
        %1269 = vrot.lane.b32.xlu0 %v1267, 112
        %v1270 = vpop.permute.xlu0 %1269
        %v1271 = vsel %vm839, %v1270, 0
        %1273 = vmatpush.xpose.msra.mxu0 0.0
        %1274 = vmatpush.xpose.msra.mxu0 0.0
        %1275 = vmatpush.xpose.msra.mxu0 0.0
        %1276 = vmatpush.xpose.msra.mxu0 0.0
        %1277 = vmatpush.xpose.msra.mxu0 0.0
        %1278 = vmatpush.xpose.msra.mxu0 0.0
        %1279 = vmatpush.xpose.msra.mxu0 0.0
        %1280 = vmatpush.xpose.msra.mxu0 0.0
        %1281 = vmatpush.xpose.msra.mxu0 0.0
        %1282 = vmatpush.xpose.msra.mxu0 0.0
        %1283 = vmatpush.xpose.msra.mxu0 0.0
        %1284 = vmatpush.xpose.msra.mxu0 0.0
        %1285 = vmatpush.xpose.msra.mxu0 0.0
        %1286 = vmatpush.xpose.msra.mxu0 0.0
        %1287 = vmatpush.xpose.msra.mxu0 0.0
        %1288 = vmatpush.xpose.msra.mxu0 %v1197
        %1289 = vmatmul.f32.gmra.mxu0 %v1271
        %v1290 = vpop.f32.mrf.mxu0
        %v1291 = vadd.f32 0.0, %v1290
        %1292 = vdwg.mxu0
        %v1293 = vmul.f32 %v1291, 0.25
        %v1294 = vsel %vm810, %v1293, -1e+30
        %v1295 = vsel %vm820, %v1294, -inf
        %1296 = vmax.xlane.f32.xlu0 %v1295
        %v1297 = vpop.xlane.xlu0 %1296
        %v1298 = vsub.f32 %v1294, %v1297
        %v1299 = vmul.f32 %v1298, 1.442695
        %v1300 = vpow.pop %v1299
        %v1301 = vsel %vm820, %v1300, 0.0
        %1302 = vadd.xlane.f32.xlu0 %v1301
        %v1303 = vpop.xlane.xlu0 %1302
        %v1304 = vrcp.pop %v1303
        %v1305 = vmul.f32 %v1300, %v1304
        %v1306 = vpack.c.bf16 %v1305, %v1305
        %v1308 = vsel %vm820, %v1306, 0
        %1310 = vmatpush.bf16.msra.mxu0 0
        %1311 = vmatpush.bf16.msra.mxu0 0
        %1312 = vmatpush.bf16.msra.mxu0 0
        %1313 = vmatpush.bf16.msra.mxu0 0
        %1314 = vmatpush.bf16.msra.mxu0 0
        %1315 = vmatpush.bf16.msra.mxu0 0
        %1316 = vmatpush.bf16.msra.mxu0 0
        %1317 = vmatpush.bf16.msra.mxu0 %v1237
        %1318 = vmatmul.bf16.gmra.mxu0 %v1308
        %v1319 = vpop.f32.mrf.mxu0
        %v1320 = vadd.f32 0.0, %v1319
        %v1321 = vpop.f32.mrf.mxu0
        %1322 = vdwg.mxu0
        %v1323 = vpack.c.bf16 %v1320, %v1320
        %1325 = vrot.lane.b32.xlu0 %v1323, 16
        %v1326 = vpop.permute.xlu0 %1325
        %1328 = vst.msk [vmem:[#allocation2 + $0x4] sm:$0xf] %vm981, %v1326
        %1329 = vrot.lane.b32.xlu0 %v1166, 104
        %v1330 = vpop.permute.xlu0 %1329
        %1332 = vrot.lane.b32.xlu0 %v756, 120
        %v1333 = vpop.permute.xlu0 %1332
        %v1335 = vsel %vm820, %v1330, %v1333
        %v1336 = vmul.f32 %v756, %v912
        %v1337 = vmul.f32 %v1335, %v805
        %1339 = vrot.lane.b32.xlu0 %v1337, 16
        %v1340 = vpop.permute.xlu0 %1339
        %v1342 = vadd.f32 %v1336, %v1340
        %1343 = vrot.lane.b32.xlu0 %v1180, 88
        %v1344 = vpop.permute.xlu0 %1343
        %1346 = vrot.lane.b32.xlu0 %v710, 104
        %v1347 = vpop.permute.xlu0 %1346
        %v1349 = vsel %vm820, %v1344, %v1347
        %v1350 = vmul.f32 %v710, %v1005
        %v1351 = vmul.f32 %v1349, %v805
        %1353 = vrot.lane.b32.xlu0 %v1351, 32
        %v1354 = vpop.permute.xlu0 %1353
        %v1356 = vadd.f32 %v1350, %v1354
        %1358 = vrot.lane.b32.xlu0 %v1356, 96
        %v1359 = vpop.permute.xlu0 %1358
        %1361 = vrot.lane.b32.xlu0 %v1342, 112
        %v1362 = vpop.permute.xlu0 %1361
        %v1363 = vsel %vm839, %v1359, 0
        %v1365 = vsel %vm839, %v1362, 0
        %1367 = vmatpush.xpose.msra.mxu0 0.0
        %1368 = vmatpush.xpose.msra.mxu0 0.0
        %1369 = vmatpush.xpose.msra.mxu0 0.0
        %1370 = vmatpush.xpose.msra.mxu0 0.0
        %1371 = vmatpush.xpose.msra.mxu0 0.0
        %1372 = vmatpush.xpose.msra.mxu0 0.0
        %1373 = vmatpush.xpose.msra.mxu0 0.0
        %1374 = vmatpush.xpose.msra.mxu0 0.0
        %1375 = vmatpush.xpose.msra.mxu0 0.0
        %1376 = vmatpush.xpose.msra.mxu0 0.0
        %1377 = vmatpush.xpose.msra.mxu0 0.0
        %1378 = vmatpush.xpose.msra.mxu0 0.0
        %1379 = vmatpush.xpose.msra.mxu0 0.0
        %1380 = vmatpush.xpose.msra.mxu0 0.0
        %1381 = vmatpush.xpose.msra.mxu0 0.0
        %1382 = vmatpush.xpose.msra.mxu0 %v1365
        %1383 = vmatmul.f32.gmra.mxu0 %v1363
        %v1384 = vpop.f32.mrf.mxu0
        %v1385 = vadd.f32 0.0, %v1384
        %1386 = vdwg.mxu0
        %v1387 = vmul.f32 %v1385, 0.25
        %v1388 = vsel %vm810, %v1387, -1e+30
        %v1389 = vsel %vm820, %v1388, -inf
        %1390 = vmax.xlane.f32.xlu0 %v1389
        %v1391 = vpop.xlane.xlu0 %1390
        %v1392 = vsub.f32 %v1388, %v1391
        %v1393 = vmul.f32 %v1392, 1.442695
        %v1394 = vpow.pop %v1393
        %v1395 = vsel %vm820, %v1394, 0.0
        %1396 = vadd.xlane.f32.xlu0 %v1395
        %v1397 = vpop.xlane.xlu0 %1396
        %v1398 = vrcp.pop %v1397
        %v1399 = vmul.f32 %v1394, %v1398
        %v1400 = vpack.c.bf16 %v1399, %v1399
        %1402 = vrot.lane.b32.xlu0 %v1179, 112
        %v1403 = vpop.permute.xlu0 %1402
        %v1405 = vsel %vm820, %v1400, 0
        %v1408 = vsel %vm883, %v1403, 0
        %1410 = vmatpush.bf16.msra.mxu0 0
        %1411 = vmatpush.bf16.msra.mxu0 0
        %1412 = vmatpush.bf16.msra.mxu0 0
        %1413 = vmatpush.bf16.msra.mxu0 0
        %1414 = vmatpush.bf16.msra.mxu0 0
        %1415 = vmatpush.bf16.msra.mxu0 0
        %1416 = vmatpush.bf16.msra.mxu0 0
        %1417 = vmatpush.bf16.msra.mxu0 %v1408
        %1418 = vmatmul.bf16.gmra.mxu0 %v1405
        %v1419 = vpop.f32.mrf.mxu0
        %v1420 = vadd.f32 0.0, %v1419
        %v1421 = vpop.f32.mrf.mxu0
        %1422 = vdwg.mxu0
        %v1423 = vpack.c.bf16 %v1420, %v1420
        %1425 = vrot.lane.b32.xlu0 %v1423, 32
        %v1426 = vpop.permute.xlu0 %1425
        %1428 = vst.msk [vmem:[#allocation2 + $0x4] sm:$0xf] %vm1085, %v1426
        %1429 = vrot.lane.b32.xlu0 %v1180, 72
        %v1430 = vpop.permute.xlu0 %1429
        %1432 = vrot.lane.b32.xlu0 %v710, 88
        %v1433 = vpop.permute.xlu0 %1432
        %v1435 = vsel %vm820, %v1430, %v1433
        %v1436 = vmul.f32 %v710, %v1095
        %v1437 = vmul.f32 %v1435, %v805
        %1439 = vrot.lane.b32.xlu0 %v1437, 48
        %v1440 = vpop.permute.xlu0 %1439
        %v1442 = vadd.f32 %v1436, %v1440
        %1444 = vrot.lane.b32.xlu0 %v1442, 80
        %v1445 = vpop.permute.xlu0 %1444
        %v1446 = vsel %vm839, %v1445, 0
        %1448 = vmatpush.xpose.msra.mxu0 0.0
        %1449 = vmatpush.xpose.msra.mxu0 0.0
        %1450 = vmatpush.xpose.msra.mxu0 0.0
        %1451 = vmatpush.xpose.msra.mxu0 0.0
        %1452 = vmatpush.xpose.msra.mxu0 0.0
        %1453 = vmatpush.xpose.msra.mxu0 0.0
        %1454 = vmatpush.xpose.msra.mxu0 0.0
        %1455 = vmatpush.xpose.msra.mxu0 0.0
        %1456 = vmatpush.xpose.msra.mxu0 0.0
        %1457 = vmatpush.xpose.msra.mxu0 0.0
        %1458 = vmatpush.xpose.msra.mxu0 0.0
        %1459 = vmatpush.xpose.msra.mxu0 0.0
        %1460 = vmatpush.xpose.msra.mxu0 0.0
        %1461 = vmatpush.xpose.msra.mxu0 0.0
        %1462 = vmatpush.xpose.msra.mxu0 0.0
        %1463 = vmatpush.xpose.msra.mxu0 %v1365
        %1464 = vmatmul.f32.gmra.mxu0 %v1446
        %v1465 = vpop.f32.mrf.mxu0
        %v1466 = vadd.f32 0.0, %v1465
        %1467 = vdwg.mxu0
        %v1468 = vmul.f32 %v1466, 0.25
        %v1469 = vsel %vm810, %v1468, -1e+30
        %v1470 = vsel %vm820, %v1469, -inf
        %1471 = vmax.xlane.f32.xlu0 %v1470
        %v1472 = vpop.xlane.xlu0 %1471
        %v1473 = vsub.f32 %v1469, %v1472
        %v1474 = vmul.f32 %v1473, 1.442695
        %v1475 = vpow.pop %v1474
        %v1476 = vsel %vm820, %v1475, 0.0
        %1477 = vadd.xlane.f32.xlu0 %v1476
        %v1478 = vpop.xlane.xlu0 %1477
        %v1479 = vrcp.pop %v1478
        %v1480 = vmul.f32 %v1475, %v1479
        %v1481 = vpack.c.bf16 %v1480, %v1480
        %v1483 = vsel %vm820, %v1481, 0
        %1485 = vmatpush.bf16.msra.mxu0 0
        %1486 = vmatpush.bf16.msra.mxu0 0
        %1487 = vmatpush.bf16.msra.mxu0 0
        %1488 = vmatpush.bf16.msra.mxu0 0
        %1489 = vmatpush.bf16.msra.mxu0 0
        %1490 = vmatpush.bf16.msra.mxu0 0
        %1491 = vmatpush.bf16.msra.mxu0 0
        %1492 = vmatpush.bf16.msra.mxu0 %v1408
        %1493 = vmatmul.bf16.gmra.mxu0 %v1483
        %v1494 = vpop.f32.mrf.mxu0
        %v1495 = vadd.f32 0.0, %v1494
        %v1496 = vpop.f32.mrf.mxu0
        %1497 = vdwg.mxu0
        %v1498 = vpack.c.bf16 %v1495, %v1495
        %1500 = vrot.lane.b32.xlu0 %v1498, 48
        %v1501 = vpop.permute.xlu0 %1500
        %1503 = vst.msk [vmem:[#allocation2 + $0x4] sm:$0xf] %vm1164, %v1501
        %v1504 = vld [vmem:[#allocation2] sm:$0xf]
        %v1505 = vld [vmem:[#allocation2 + $0x4] sm:$0xf]
        %v1506 = vld [vmem:[%s570] sm:$0xf]
        %v1507 = vld [vmem:[%s570 + $0x4] sm:$0xf]
        %v1508 = vld [vmem:[%s570 + $0x8] sm:$0xf]
        %v1509 = vld [vmem:[%s570 + $0xc] sm:$0xf]
        %v1510 = vld [vmem:[%s570 + $0x10] sm:$0xf]
        %v1511 = vld [vmem:[%s570 + $0x14] sm:$0xf]
        %v1512 = vld [vmem:[%s570 + $0x18] sm:$0xf]
        %v1513 = vld [vmem:[%s570 + $0x1c] sm:$0xf]
        %v1516 = vunpack.c.l.b16 %v1504
        %v1517 = vunpack.c.l.b16 %v1505
        %v1518 = vpack.c.b16 %v1517, %v1516
        %v1527 = vunpack.c.l.b16 %v1506
        %v1528 = vunpack.c.l.b16 %v1507
        %v1529 = vunpack.c.l.b16 %v1508
        %v1530 = vunpack.c.l.b16 %v1509
        %v1531 = vunpack.c.l.b16 %v1510
        %v1532 = vunpack.c.l.b16 %v1511
        %v1533 = vunpack.c.l.b16 %v1512
        %v1534 = vunpack.c.l.b16 %v1513
        %v1535 = vpack.c.b16 %v1528, %v1527
        %v1536 = vpack.c.b16 %v1530, %v1529
        %v1537 = vpack.c.b16 %v1532, %v1531
        %v1538 = vpack.c.b16 %v1534, %v1533
        %v1544 = vsel %vm616, %v1518, 0
        %1546 = vmatpush.bf16.msra.mxu0 0
        %1547 = vmatpush.bf16.msra.mxu0 0
        %1548 = vmatpush.bf16.msra.mxu0 0
        %1549 = vmatpush.bf16.msra.mxu0 0
        %1550 = vmatpush.bf16.msra.mxu0 %v1538
        %1551 = vmatpush.bf16.msra.mxu0 %v1537
        %1552 = vmatpush.bf16.msra.mxu0 %v1536
        %1553 = vmatpush.bf16.msra.mxu0 %v1535
        %1554 = vmatmul.bf16.gmra.mxu0 %v1544
        %v1555 = vpop.f32.mrf.mxu0
        %v1556 = vadd.f32 0.0, %v1555
        %v1557 = vpop.f32.mrf.mxu0
        %v1558 = vadd.f32 0.0, %v1557
        %1559 = vdwg.mxu0
        %v1560 = vadd.f32 %v612, %v1556
        %v1561 = vadd.f32 %v613, %v1558
        %1562 = vst.msk [vmem:[%s12] sm:$0xff] %vm616, %v1560
        %1563 = vst.msk [vmem:[%s12 + $0x8] sm:$0xff] %vm616, %v1561
        %v1564 = vmul.f32 %v1560, %v1560
        %v1565 = vmul.f32 %v1561, %v1561
        %v1566 = vsel %vm616, %v1564, 0.0
        %1567 = vadd.xlane.f32.xlu0 %v1566
        %v1568 = vpop.xlane.xlu0 %1567
        %v1569 = vsel %vm616, %v1565, 0.0
        %1570 = vadd.xlane.f32.xlu0 %v1569
        %v1571 = vpop.xlane.xlu0 %1570
        %v1572 = vmul.f32 %v1568, %v629
        %v1573 = vmul.f32 %v1571, %v629
        %v1574 = vadd.f32 %v1572, 1e-05
        %v1575 = vadd.f32 %v1573, 1e-05
        %v1576 = vrsqrt.pop %v1574
        %v1577 = vmul.f32 %v1576, %v1574
        %v1578 = vmul.f32 %v1577, %v1576
        %v1579 = vmul.f32 0.5, %v1578
        %v1580 = vsub.f32 1.5, %v1579
        %v1581 = vmul.f32 %v1576, %v1580
        %vm1582 = vweird.f32 %v1574
        %vm1583 = vweird.f32 %v1576
        %vm1584 = vmor %vm1582, %vm1583
        %v1585 = vsel %vm1584, %v1576, %v1581
        %v1586 = vrsqrt.pop %v1575
        %v1587 = vmul.f32 %v1586, %v1575
        %v1588 = vmul.f32 %v1587, %v1586
        %v1589 = vmul.f32 0.5, %v1588
        %v1590 = vsub.f32 1.5, %v1589
        %v1591 = vmul.f32 %v1586, %v1590
        %vm1592 = vweird.f32 %v1575
        %vm1593 = vweird.f32 %v1586
        %vm1594 = vmor %vm1592, %vm1593
        %v1595 = vsel %vm1594, %v1586, %v1591
        %v1596 = vmul.f32 %v1560, %v1585
        %v1597 = vmul.f32 %v1561, %v1595
        %v1598 = vld [vmem:[%s550] sm:$0x1]
        %v1600 = vperm.slane %v1598, 0
        %v1602 = vmul.f32 %v1596, %v1600
        %v1603 = vmul.f32 %v1597, %v1600
        %v1604 = vpack.c.bf16 %v1602, %v1602
        %v1605 = vpack.c.bf16 %v1603, %v1603
        %vm1606 = vcmask 519168
        %1607 = vst.msk [vmem:[#allocation3] sm:$0xf] %vm1606, %v1604
        %1608 = vst.msk [vmem:[#allocation3 + $0x4] sm:$0xf] %vm1606, %v1605
      $region76: #{_lambda_.4} parent=67 // pred_fallthru
        _
      %v1609 = vld [vmem:[#allocation3] sm:$0xf]
      %v1610 = vld [vmem:[#allocation3 + $0x4] sm:$0xf]
      %v1611 = vld [vmem:[%s578] sm:$0xf]
      %v1612 = vld [vmem:[%s578 + $0x4] sm:$0xf]
      %v1613 = vld [vmem:[%s578 + $0x8] sm:$0xf]
      %v1614 = vld [vmem:[%s578 + $0xc] sm:$0xf]
      %v1615 = vld [vmem:[%s578 + $0x10] sm:$0xf]
      %v1616 = vld [vmem:[%s578 + $0x14] sm:$0xf]
      %v1617 = vld [vmem:[%s578 + $0x18] sm:$0xf]
      %v1618 = vld [vmem:[%s578 + $0x1c] sm:$0xf]
      %v1621 = vunpack.c.l.b16 %v1609
      %v1622 = vunpack.c.l.b16 %v1610
      %v1623 = vpack.c.b16 %v1622, %v1621
      %v1632 = vunpack.c.l.b16 %v1611
      %v1633 = vunpack.c.l.b16 %v1612
      %v1634 = vunpack.c.l.b16 %v1613
      %v1635 = vunpack.c.l.b16 %v1614
      %v1636 = vunpack.c.l.b16 %v1615
      %v1637 = vunpack.c.l.b16 %v1616
      %v1638 = vunpack.c.l.b16 %v1617
      %v1639 = vunpack.c.l.b16 %v1618
      %v1640 = vpack.c.b16 %v1633, %v1632
      %v1641 = vpack.c.b16 %v1635, %v1634
      %v1642 = vpack.c.b16 %v1637, %v1636
      %v1643 = vpack.c.b16 %v1639, %v1638
      %vm1648 = vcmask 523264
      %v1650 = vsel %vm1648, %v1623, 0
      %1652 = vmatpush.bf16.msra.mxu0 0
      %1653 = vmatpush.bf16.msra.mxu0 0
      %1654 = vmatpush.bf16.msra.mxu0 0
      %1655 = vmatpush.bf16.msra.mxu0 0
      %1656 = vmatpush.bf16.msra.mxu0 %v1643
      %1657 = vmatpush.bf16.msra.mxu0 %v1642
      %1658 = vmatpush.bf16.msra.mxu0 %v1641
      %1659 = vmatpush.bf16.msra.mxu0 %v1640
      %1660 = vmatmul.bf16.gmra.mxu0 %v1650
      %v1661 = vpop.f32.mrf.mxu0
      %v1662 = vadd.f32 0.0, %v1661
      %v1663 = vpop.f32.mrf.mxu0
      %v1664 = vadd.f32 0.0, %v1663
      %1665 = vdwg.mxu0
      %v1666 = vld [vmem:[%s586] sm:$0xf]
      %v1667 = vld [vmem:[%s586 + $0x4] sm:$0xf]
      %v1668 = vld [vmem:[%s586 + $0x8] sm:$0xf]
      %v1669 = vld [vmem:[%s586 + $0xc] sm:$0xf]
      %v1670 = vld [vmem:[%s586 + $0x10] sm:$0xf]
      %v1671 = vld [vmem:[%s586 + $0x14] sm:$0xf]
      %v1672 = vld [vmem:[%s586 + $0x18] sm:$0xf]
      %v1673 = vld [vmem:[%s586 + $0x1c] sm:$0xf]
      %v1682 = vunpack.c.l.b16 %v1666
      %v1683 = vunpack.c.l.b16 %v1667
      %v1684 = vunpack.c.l.b16 %v1668
      %v1685 = vunpack.c.l.b16 %v1669
      %v1686 = vunpack.c.l.b16 %v1670
      %v1687 = vunpack.c.l.b16 %v1671
      %v1688 = vunpack.c.l.b16 %v1672
      %v1689 = vunpack.c.l.b16 %v1673
      %v1690 = vpack.c.b16 %v1683, %v1682
      %v1691 = vpack.c.b16 %v1685, %v1684
      %v1692 = vpack.c.b16 %v1687, %v1686
      %v1693 = vpack.c.b16 %v1689, %v1688
      %1698 = vmatpush.bf16.msra.mxu0 0
      %1699 = vmatpush.bf16.msra.mxu0 0
      %1700 = vmatpush.bf16.msra.mxu0 0
      %1701 = vmatpush.bf16.msra.mxu0 0
      %1702 = vmatpush.bf16.msra.mxu0 %v1693
      %1703 = vmatpush.bf16.msra.mxu0 %v1692
      %1704 = vmatpush.bf16.msra.mxu0 %v1691
      %1705 = vmatpush.bf16.msra.mxu0 %v1690
      %1706 = vmatmul.bf16.gmra.mxu0 %v1650
      %v1707 = vpop.f32.mrf.mxu0
      %v1708 = vadd.f32 0.0, %v1707
      %v1709 = vpop.f32.mrf.mxu0
      %v1710 = vadd.f32 0.0, %v1709
      %1711 = vdwg.mxu0
      %v1712 = vxor.u32 %v1662, 2147483648
      %v1713 = vxor.u32 %v1664, 2147483648
      %v1714 = vmul.f32 %v1712, 1.442695
      %v1715 = vpow.pop %v1714
      %v1716 = vmul.f32 %v1713, 1.442695
      %v1717 = vpow.pop %v1716
      %v1718 = vadd.f32 %v1715, 1.0
      %v1719 = vadd.f32 %v1717, 1.0
      %v1720 = vrcp.pop %v1718
      %v1721 = vmul.f32 %v1718, %v1720
      %v1722 = vsub.f32 1.0, %v1721
      %v1723 = vmul.f32 %v1720, %v1722
      %v1724 = vadd.f32 %v1720, %v1723
      %vm1725 = vweird.f32 %v1718
      %vm1726 = vweird.f32 %v1720
      %vm1727 = vmor %vm1725, %vm1726
      %v1728 = vsel %vm1727, %v1720, %v1724
      %v1729 = vand.u32 2147483647, %v1718
      %vm1730 = vcmp.eq.f32.partialorder %v1729, 8.507059e+37
      %v1731 = vand.u32 %v1718, 2147483648
      %v1732 = vor.u32 1.1754944e-38, %v1731
      %v1733 = vsel %vm1730, %v1732, %v1728
      %v1734 = vmul.f32 1.0, %v1733
      %v1735 = vrcp.pop %v1719
      %v1736 = vmul.f32 %v1719, %v1735
      %v1737 = vsub.f32 1.0, %v1736
      %v1738 = vmul.f32 %v1735, %v1737
      %v1739 = vadd.f32 %v1735, %v1738
      %vm1740 = vweird.f32 %v1719
      %vm1741 = vweird.f32 %v1735
      %vm1742 = vmor %vm1740, %vm1741
      %v1743 = vsel %vm1742, %v1735, %v1739
      %v1744 = vand.u32 2147483647, %v1719
      %vm1745 = vcmp.eq.f32.partialorder %v1744, 8.507059e+37
      %v1746 = vand.u32 %v1719, 2147483648
      %v1747 = vor.u32 1.1754944e-38, %v1746
      %v1748 = vsel %vm1745, %v1747, %v1743
      %v1749 = vmul.f32 1.0, %v1748
      %v1750 = vmul.f32 %v1662, %v1734
      %v1751 = vmul.f32 %v1664, %v1749
      %v1752 = vmul.f32 %v1750, %v1708
      %v1753 = vmul.f32 %v1751, %v1710
      %v1754 = vpack.c.bf16 %v1753, %v1752
      %v1755 = vld [vmem:[%s12] sm:$0xff]
      %v1756 = vld [vmem:[%s12 + $0x8] sm:$0xff]
      %v1757 = vld [vmem:[%s595] sm:$0xf]
      %v1758 = vld [vmem:[%s595 + $0x4] sm:$0xf]
      %v1759 = vld [vmem:[%s595 + $0x8] sm:$0xf]
      %v1760 = vld [vmem:[%s595 + $0xc] sm:$0xf]
      %v1761 = vld [vmem:[%s595 + $0x10] sm:$0xf]
      %v1762 = vld [vmem:[%s595 + $0x14] sm:$0xf]
      %v1763 = vld [vmem:[%s595 + $0x18] sm:$0xf]
      %v1764 = vld [vmem:[%s595 + $0x1c] sm:$0xf]
      %v1765 = vld [vmem:[%s595 + $0x20] sm:$0xf]
      %v1766 = vld [vmem:[%s595 + $0x24] sm:$0xf]
      %v1767 = vld [vmem:[%s595 + $0x28] sm:$0xf]
      %v1768 = vld [vmem:[%s595 + $0x2c] sm:$0xf]
      %v1769 = vld [vmem:[%s595 + $0x30] sm:$0xf]
      %v1770 = vld [vmem:[%s595 + $0x34] sm:$0xf]
      %v1771 = vld [vmem:[%s595 + $0x38] sm:$0xf]
      %v1772 = vld [vmem:[%s595 + $0x3c] sm:$0xf]
      %v1789 = vunpack.c.l.b16 %v1757
      %v1790 = vunpack.c.l.b16 %v1758
      %v1791 = vunpack.c.l.b16 %v1759
      %v1792 = vunpack.c.l.b16 %v1760
      %v1793 = vunpack.c.l.b16 %v1761
      %v1794 = vunpack.c.l.b16 %v1762
      %v1795 = vunpack.c.l.b16 %v1763
      %v1796 = vunpack.c.l.b16 %v1764
      %v1797 = vunpack.c.l.b16 %v1765
      %v1798 = vunpack.c.l.b16 %v1766
      %v1799 = vunpack.c.l.b16 %v1767
      %v1800 = vunpack.c.l.b16 %v1768
      %v1801 = vunpack.c.l.b16 %v1769
      %v1802 = vunpack.c.l.b16 %v1770
      %v1803 = vunpack.c.l.b16 %v1771
      %v1804 = vunpack.c.l.b16 %v1772
      %v1805 = vpack.c.b16 %v1790, %v1789
      %v1806 = vpack.c.b16 %v1792, %v1791
      %v1807 = vpack.c.b16 %v1794, %v1793
      %v1808 = vpack.c.b16 %v1796, %v1795
      %v1809 = vpack.c.b16 %v1798, %v1797
      %v1810 = vpack.c.b16 %v1800, %v1799
      %v1811 = vpack.c.b16 %v1802, %v1801
      %v1812 = vpack.c.b16 %v1804, %v1803
      %1821 = vmatpush.bf16.msra.mxu0 %v1812
      %1822 = vmatpush.bf16.msra.mxu0 %v1811
      %1823 = vmatpush.bf16.msra.mxu0 %v1810
      %1824 = vmatpush.bf16.msra.mxu0 %v1809
      %1825 = vmatpush.bf16.msra.mxu0 %v1808
      %1826 = vmatpush.bf16.msra.mxu0 %v1807
      %1827 = vmatpush.bf16.msra.mxu0 %v1806
      %1828 = vmatpush.bf16.msra.mxu0 %v1805
      %1829 = vmatmul.bf16.gmra.mxu0 %v1754
      %v1830 = vpop.f32.mrf.mxu0
      %v1831 = vadd.f32 0.0, %v1830
      %v1832 = vpop.f32.mrf.mxu0
      %v1833 = vadd.f32 0.0, %v1832
      %1834 = vdwg.mxu0
      %v1835 = vadd.f32 %v1755, %v1831
      %v1836 = vadd.f32 %v1756, %v1833
      %1837 = vst.msk [vmem:[%s12] sm:$0xff] %vm1648, %v1835
      %1838 = vst.msk [vmem:[%s12 + $0x8] sm:$0xff] %vm1648, %v1836
      // Predicated region
      $region77: #{_lambda_.4} parent=67 // pred_check
        %p1839 = pneg %p351
      $region78: #{_lambda_.4} parent=67 // pred_check_branch
        %1841 = sbr.rel (%p1839) target = $region80
      $region79: #{_lambda_.4} parent=67 // pred_region
        _
      $region80: #{_lambda_.4} parent=67 // pred_fallthru
        _
      // Predicated region
      $region81: #{_lambda_.4} parent=67 // pred_check
        %p1842 = pneg %p351
      $region82: #{_lambda_.4} parent=67 // pred_check_branch
        %1844 = sbr.rel (%p1842) target = $region84
      $region83: #{_lambda_.4} parent=67 // pred_region
        _
      $region84: #{_lambda_.4} parent=67 // pred_fallthru
        _
    $region68: #{_lambda_.4} parent=5 // pred_fallthru
      _
    %p1845 = scmp.le.s32.totalorder 2, %s18
    // Predicated region
    $region85: #{_lambda_.4} parent=5 // pred_check
      %p1846 = pneg %p1845
    $region86: #{_lambda_.4} parent=5 // pred_check_branch
      %1848 = sbr.rel (%p1846) target = $region88
    $region87: #{_lambda_.4} parent=5 // pred_region
      %s1849 = ssub.s32 %s18, 2
    $region88: #{_lambda_.4} parent=5 // pred_fallthru
      _
  $region6: #{_lambda_.4} parent=0 // loop_footer
    %s22 = sadd.s32 1, %s18
  $region7: #{_lambda_.4} parent=0 // loop_footer_branch
    %17 = sbr.rel target = $region3
  $region8: #{_lambda_.4} parent=0 // loop_exit
    _

</llo_original>
